<compile_context>
chip_gen: v6e
topology: v6e:2x2x1
jax: 0.10.0
libtpu: 0.0.40
codegen_flags: <defaults>
</compile_context>

<pallas_src>
import functools

import jax
import jax.numpy as jnp
from jax import lax
from jax.experimental import pallas as pl
from jax.experimental.pallas import tpu as pltpu


def _round_up(x, m):
    return ((x + m - 1) // m) * m


def _link_predictor_kernel(src_ref, dst_ref,
                           w1a_ref, w1b_ref, b1_ref,
                           w2_ref, b2_ref,
                           out_ref, *, k_extra, compute_dtype):
    """One batch tile of fc2(relu(fc1(concat(src, dst))))."""
    # Contract dim 1 of x against dim 1 of W  ==  x @ W^T (no transposed copies).
    dn = (((1,), (1,)), ((), ()))

    # In-kernel cast to the MXU compute dtype keeps the HBM read at the native
    # input width; the lane pad of the contracting dim (zeros against zero
    # weight columns) makes the MXU K-tiles full. Both are VPU work that hides
    # under the MXU/DMA.
    src_t = src_ref[...].astype(compute_dtype)
    dst_t = dst_ref[...].astype(compute_dtype)
    if k_extra:  # static at trace time
        zpad = jnp.zeros((src_t.shape[0], k_extra), dtype=compute_dtype)
        src_t = jnp.concatenate([src_t, zpad], axis=-1)
        dst_t = jnp.concatenate([dst_t, zpad], axis=-1)

    # fc1 on the (folded) concatenated input: two MXU matmuls, f32 accumulate.
    h = lax.dot_general(src_t, w1a_ref[...], dn,
                        preferred_element_type=jnp.float32)
    h = h + lax.dot_general(dst_t, w1b_ref[...], dn,
                            preferred_element_type=jnp.float32)
    # bias + ReLU epilogue stays in f32 (v5e has no bf16 VPU).
    h = jnp.maximum(h + b1_ref[...], 0.0)

    # fc2: feed the MXU in the weight compute dtype, accumulate in f32.
    y = lax.dot_general(h.astype(w2_ref.dtype), w2_ref[...], dn,
                        preferred_element_type=jnp.float32)
    out_ref[...] = (y + b2_ref[...]).astype(out_ref.dtype)


def prepare_link_predictor_params(w1, b1, w2, b2, *, param_dtype=jnp.bfloat16):
    """One-time parameter prep (model-load time, not per call): split W1 for
    the concat folding, zero-pad output AND contracting feature dims to 128-lane
    multiples, cast weights to the MXU compute dtype."""
    n_hid = w1.shape[0]
    n_out = w2.shape[0]
    assert w1.shape == (n_hid, 2 * n_hid)
    assert b1.shape == (n_hid,)
    assert w2.shape == (n_out, n_hid)
    assert b2.shape == (n_out,)

    n_hid_pad = _round_up(n_hid, 128)   # lane-dense fc1 output dim AND K dim
    n_out_pad = _round_up(n_out, 128)   # lane-dense output slab

    # TODO(synk): on v7x the MXU natively takes fp8; param_dtype could be an
    # fp8 type there (keep bf16 as the portable default for v5e/v6e).
    p = n_hid_pad - n_hid
    w1a = jnp.pad(w1[:, :n_hid], ((0, p), (0, p))).astype(param_dtype)
    w1b = jnp.pad(w1[:, n_hid:], ((0, p), (0, p))).astype(param_dtype)
    w2p = jnp.pad(w2, ((0, n_out_pad - n_out), (0, p))).astype(param_dtype)
    b1p = jnp.pad(b1, (0, p)).astype(jnp.float32).reshape(1, n_hid_pad)
    b2p = jnp.pad(b2, (0, n_out_pad - n_out)).astype(jnp.float32).reshape(1, n_out_pad)

    return {"w1a": w1a, "w1b": w1b, "b1": b1p, "w2": w2p, "b2": b2p,
            "n_hid": n_hid, "n_out": n_out}


def link_predictor(src, dst, params, *, block_b=512, out_dtype=None,
                   return_padded=False):
    """src, dst: (B, n_hid) arrays; params from prepare_link_predictor_params.
    Returns (B, n_out) in `out_dtype` (default: src.dtype), or the padded
    (B, n_out_pad) slab if return_padded=True (avoids the slicing copy)."""
    B, n_hid = src.shape
    assert dst.shape == (B, n_hid)
    assert params["n_hid"] == n_hid
    n_out = params["n_out"]

    w1a, w1b, b1 = params["w1a"], params["w1b"], params["b1"]
    w2, b2 = params["w2"], params["b2"]
    n_hid_pad = w1a.shape[0]
    n_out_pad = w2.shape[0]
    compute_dtype = w1a.dtype
    out_dtype = src.dtype if out_dtype is None else out_dtype

    # --- batch tiling: no wrapper-side padding; Pallas masks the ragged tile.
    tb = min(block_b, _round_up(B, 16))               # 16 = bf16 sublane pack
    if B > 16:
        # keep >= 2 grid steps so the "parallel" batch axis can shard across
        # both TensorCores on v7x (negligible cost on 1-TC v5e/v6e).
        tb = min(tb, _round_up(pl.cdiv(B, 2), 16))
    n_tiles = pl.cdiv(B, tb)

    k_extra = n_hid_pad - n_hid
    kernel = functools.partial(_link_predictor_kernel,
                               k_extra=k_extra, compute_dtype=compute_dtype)

    # --- VMEM budget & cost estimate -------------------------------------
    in_itemsize = src.dtype.itemsize
    out_itemsize = jnp.dtype(out_dtype).itemsize
    weight_bytes = sum(int(a.size) * a.dtype.itemsize for a in (w1a, w1b, b1, w2, b2))
    act_tile_bytes = 2 * tb * n_hid * in_itemsize             # src + dst tiles (native dtype)
    out_tile_bytes = tb * n_out_pad * out_itemsize
    kern_scratch = (tb * n_hid_pad * 4                        # f32 h
                    + 2 * tb * n_hid_pad * compute_dtype.itemsize  # padded bf16 tiles
                    + tb * n_out_pad * 4)                     # f32 y

    flops = 2 * B * (2 * n_hid_pad * n_hid_pad + n_hid_pad * n_out_pad)
    bytes_accessed = (2 * B * n_hid * in_itemsize + weight_bytes
                      + B * n_out_pad * out_itemsize)

    def _call(single_buffer_weights):
        # Resident weights (constant index maps) only need one pipeline buffer.
        wmode = ({"pipeline_mode": pl.Buffered(1)} if single_buffer_weights else {})
        wfactor = 1 if single_buffer_weights else 2
        est = wfactor * weight_bytes + 2 * (act_tile_bytes + out_tile_bytes) + kern_scratch
        # Cap well under the smallest per-core VMEM (64 MiB on v7x) so Mosaic
        # keeps headroom for internal scratch.
        vmem_limit = min(48 << 20, max(16 << 20, int(est * 1.25) + (1 << 20)))
        return pl.pallas_call(
            kernel,
            out_shape=jax.ShapeDtypeStruct((B, n_out_pad), out_dtype),
            grid=(n_tiles,),
            in_specs=[
                pl.BlockSpec((tb, n_hid), lambda i: (i, 0)),            # src tile
                pl.BlockSpec((tb, n_hid), lambda i: (i, 0)),            # dst tile
                pl.BlockSpec(w1a.shape, lambda i: (0, 0), **wmode),     # W1a resident
                pl.BlockSpec(w1b.shape, lambda i: (0, 0), **wmode),     # W1b resident
                pl.BlockSpec(b1.shape, lambda i: (0, 0), **wmode),      # b1  resident
                pl.BlockSpec(w2.shape, lambda i: (0, 0), **wmode),      # W2  resident
                pl.BlockSpec(b2.shape, lambda i: (0, 0), **wmode),      # b2  resident
            ],
            out_specs=pl.BlockSpec((tb, n_out_pad), lambda i: (i, 0)),  # lane-dense slab
            compiler_params=pltpu.CompilerParams(
                dimension_semantics=("parallel",),
                vmem_limit_bytes=vmem_limit,
            ),
            cost_estimate=pl.CostEstimate(
                flops=flops, transcendentals=0, bytes_accessed=bytes_accessed),
        )(src, dst, w1a, w1b, b1, w2, b2)

    try:
        out_padded = _call(True)
    except Exception:
        # Fallback for JAX builds where pipeline_mode isn't plumbed through the
        # top-level pallas_call pipeline; default double-buffering is used.
        out_padded = _call(False)

    if return_padded:
        return out_padded
    return out_padded[:B, :n_out]


def link_predictor_ref(src, dst, w1, b1, w2, b2):
    x = jnp.concatenate([src, dst], axis=1)
    h = jnp.maximum(x @ w1.T + b1, 0.0)
    return h @ w2.T + b2


if __name__ == "__main__":
    # Small demo shapes: exercises >=2 grid steps and the ragged last tile.
    B, n_hid, n_out = 100, 32, 8

    key = jax.random.PRNGKey(0)
    k_src, k_dst, k_w1, k_b1, k_w2, k_b2 = jax.random.split(key, 6)

    src = jax.random.normal(k_src, (B, n_hid), dtype=jnp.float32)
    dst = jax.random.normal(k_dst, (B, n_hid), dtype=jnp.float32)

    # Deterministic parameter init (PyTorch nn.Linear-style uniform bounds).
    bound1 = 1.0 / jnp.sqrt(2.0 * n_hid)
    w1 = jax.random.uniform(k_w1, (n_hid, 2 * n_hid), jnp.float32, -bound1, bound1)
    b1 = jax.random.uniform(k_b1, (n_hid,), jnp.float32, -bound1, bound1)
    bound2 = 1.0 / jnp.sqrt(float(n_hid))
    w2 = jax.random.uniform(k_w2, (n_out, n_hid), jnp.float32, -bound2, bound2)
    b2 = jax.random.uniform(k_b2, (n_out,), jnp.float32, -bound2, bound2)

    # One-time parameter prep (padding + bf16 cast), then the pipelined kernel.
    params = prepare_link_predictor_params(w1, b1, w2, b2)
    out = link_predictor(src, dst, params)
    out = jax.block_until_ready(out)

    ref = link_predictor_ref(src, dst, w1, b1, w2, b2)
    assert out.shape == (B, n_out)
    # bf16 MXU inputs with f32 accumulation -> relaxed tolerance vs f32 reference.
    assert jnp.allclose(out, ref, atol=5e-2, rtol=5e-2), \
        float(jnp.max(jnp.abs(out - ref)))

    print("KERNEL_OK")
</pallas_src>

<mosaic_0001>
module attributes {stable_mosaic.version = 11 : i64} {
  func.func @_link_predictor_kernel(%arg0: i32, %arg1: memref<64x32xf32, #tpu.memory_space<vmem>>, %arg2: memref<64x32xf32, #tpu.memory_space<vmem>>, %arg3: memref<128x128xbf16, #tpu.memory_space<vmem>>, %arg4: memref<128x128xbf16, #tpu.memory_space<vmem>>, %arg5: memref<1x128xf32, #tpu.memory_space<vmem>>, %arg6: memref<128x128xbf16, #tpu.memory_space<vmem>>, %arg7: memref<1x128xf32, #tpu.memory_space<vmem>>, %arg8: memref<64x128xf32, #tpu.memory_space<vmem>>) attributes {dimension_semantics = [#tpu.dimension_semantics<parallel>], iteration_bounds = array<i64: 2>, scalar_prefetch = 0 : i64, scratch_operands = 0 : i64, tpu.core_type = #tpu.core_type<tc>, window_params = [{transform_indices = @transform_0, window_bounds = array<i64: 64, 32>}, {transform_indices = @transform_1, window_bounds = array<i64: 64, 32>}, {pipeline_mode = #tpu.pipeline_mode<synchronous>, transform_indices = @transform_2, window_bounds = array<i64: 128, 128>}, {pipeline_mode = #tpu.pipeline_mode<synchronous>, transform_indices = @transform_3, window_bounds = array<i64: 128, 128>}, {pipeline_mode = #tpu.pipeline_mode<synchronous>, transform_indices = @transform_4, window_bounds = array<i64: 1, 128>}, {pipeline_mode = #tpu.pipeline_mode<synchronous>, transform_indices = @transform_5, window_bounds = array<i64: 128, 128>}, {pipeline_mode = #tpu.pipeline_mode<synchronous>, transform_indices = @transform_6, window_bounds = array<i64: 1, 128>}, {transform_indices = @transform_7, window_bounds = array<i64: 64, 128>}]} {
    %c0 = arith.constant 0 : index
    %c0_0 = arith.constant 0 : index
    %0 = vector.load %arg1[%c0, %c0_0] : memref<64x32xf32, #tpu.memory_space<vmem>>, vector<64x32xf32>
    %1 = arith.truncf %0 : vector<64x32xf32> to vector<64x32xbf16>
    %c0_1 = arith.constant 0 : index
    %c0_2 = arith.constant 0 : index
    %2 = vector.load %arg2[%c0_1, %c0_2] : memref<64x32xf32, #tpu.memory_space<vmem>>, vector<64x32xf32>
    %3 = arith.truncf %2 : vector<64x32xf32> to vector<64x32xbf16>
    %cst = arith.constant 0.000000e+00 : bf16
    %4 = vector.broadcast %cst : bf16 to vector<64x96xbf16>
    %5 = tpu.concatenate %1, %4 in 1 : vector<64x32xbf16>, vector<64x96xbf16> -> vector<64x128xbf16>
    %6 = tpu.concatenate %3, %4 in 1 : vector<64x32xbf16>, vector<64x96xbf16> -> vector<64x128xbf16>
    %c0_3 = arith.constant 0 : index
    %c0_4 = arith.constant 0 : index
    %7 = vector.load %arg3[%c0_3, %c0_4] : memref<128x128xbf16, #tpu.memory_space<vmem>>, vector<128x128xbf16>
    %cst_5 = arith.constant dense<0.000000e+00> : vector<64x128xf32>
    %8 = tpu.matmul %5, %7, %cst_5 {dimension_numbers = #tpu.dot_dimension_numbers<[1], [1], [0], [0], [0, 0, 1, 0], [], []>} : vector<64x128xbf16>, vector<128x128xbf16>, vector<64x128xf32> -> vector<64x128xf32>
    %c0_6 = arith.constant 0 : index
    %c0_7 = arith.constant 0 : index
    %9 = vector.load %arg4[%c0_6, %c0_7] : memref<128x128xbf16, #tpu.memory_space<vmem>>, vector<128x128xbf16>
    %cst_8 = arith.constant dense<0.000000e+00> : vector<64x128xf32>
    %10 = tpu.matmul %6, %9, %cst_8 {dimension_numbers = #tpu.dot_dimension_numbers<[1], [1], [0], [0], [0, 0, 1, 0], [], []>} : vector<64x128xbf16>, vector<128x128xbf16>, vector<64x128xf32> -> vector<64x128xf32>
    %11 = arith.addf %8, %10 : vector<64x128xf32>
    %c0_9 = arith.constant 0 : index
    %c0_10 = arith.constant 0 : index
    %12 = vector.load %arg5[%c0_9, %c0_10] : memref<1x128xf32, #tpu.memory_space<vmem>>, vector<1x128xf32>
    %13 = vector.broadcast %12 : vector<1x128xf32> to vector<64x128xf32>
    %14 = arith.addf %11, %13 : vector<64x128xf32>
    %cst_11 = arith.constant 0.000000e+00 : f32
    %15 = vector.broadcast %cst_11 : f32 to vector<64x128xf32>
    %16 = arith.maximumf %14, %15 : vector<64x128xf32>
    %17 = arith.truncf %16 : vector<64x128xf32> to vector<64x128xbf16>
    %c0_12 = arith.constant 0 : index
    %c0_13 = arith.constant 0 : index
    %18 = vector.load %arg6[%c0_12, %c0_13] : memref<128x128xbf16, #tpu.memory_space<vmem>>, vector<128x128xbf16>
    %cst_14 = arith.constant dense<0.000000e+00> : vector<64x128xf32>
    %19 = tpu.matmul %17, %18, %cst_14 {dimension_numbers = #tpu.dot_dimension_numbers<[1], [1], [0], [0], [0, 0, 1, 0], [], []>} : vector<64x128xbf16>, vector<128x128xbf16>, vector<64x128xf32> -> vector<64x128xf32>
    %c0_15 = arith.constant 0 : index
    %c0_16 = arith.constant 0 : index
    %20 = vector.load %arg7[%c0_15, %c0_16] : memref<1x128xf32, #tpu.memory_space<vmem>>, vector<1x128xf32>
    %21 = vector.broadcast %20 : vector<1x128xf32> to vector<64x128xf32>
    %22 = arith.addf %19, %21 : vector<64x128xf32>
    %c0_17 = arith.constant 0 : index
    %c0_18 = arith.constant 0 : index
    %23 = vector.load %arg8[%c0_17, %c0_18] : memref<64x128xf32, #tpu.memory_space<vmem>>, vector<64x128xf32>
    tpu.vector_store %arg8[%c0_17, %c0_18], %22 {strides = array<i32>} : memref<64x128xf32, #tpu.memory_space<vmem>>, vector<64x128xf32>,
    return
  }
  func.func @transform_0(%arg0: i32) -> (i32, i32) {
    %c0_i32 = arith.constant 0 : i32
    %c0_i32_0 = arith.constant 0 : i32
    return %arg0, %c0_i32 : i32, i32
  }
  func.func @transform_1(%arg0: i32) -> (i32, i32) {
    %c0_i32 = arith.constant 0 : i32
    %c0_i32_0 = arith.constant 0 : i32
    return %arg0, %c0_i32 : i32, i32
  }
  func.func @transform_2(%arg0: i32) -> (i32, i32) {
    %c0_i32 = arith.constant 0 : i32
    %c0_i32_0 = arith.constant 0 : i32
    %c0_i32_1 = arith.constant 0 : i32
    return %c0_i32, %c0_i32_0 : i32, i32
  }
  func.func @transform_3(%arg0: i32) -> (i32, i32) {
    %c0_i32 = arith.constant 0 : i32
    %c0_i32_0 = arith.constant 0 : i32
    %c0_i32_1 = arith.constant 0 : i32
    return %c0_i32, %c0_i32_0 : i32, i32
  }
  func.func @transform_4(%arg0: i32) -> (i32, i32) {
    %c0_i32 = arith.constant 0 : i32
    %c0_i32_0 = arith.constant 0 : i32
    %c0_i32_1 = arith.constant 0 : i32
    return %c0_i32, %c0_i32_0 : i32, i32
  }
  func.func @transform_5(%arg0: i32) -> (i32, i32) {
    %c0_i32 = arith.constant 0 : i32
    %c0_i32_0 = arith.constant 0 : i32
    %c0_i32_1 = arith.constant 0 : i32
    return %c0_i32, %c0_i32_0 : i32, i32
  }
  func.func @transform_6(%arg0: i32) -> (i32, i32) {
    %c0_i32 = arith.constant 0 : i32
    %c0_i32_0 = arith.constant 0 : i32
    %c0_i32_1 = arith.constant 0 : i32
    return %c0_i32, %c0_i32_0 : i32, i32
  }
  func.func @transform_7(%arg0: i32) -> (i32, i32) {
    %c0_i32 = arith.constant 0 : i32
    %c0_i32_0 = arith.constant 0 : i32
    return %arg0, %c0_i32 : i32, i32
  }
}

module attributes {stable_mosaic.version = 11 : i64} {
  func.func @_link_predictor_kernel(%arg0: i32, %arg1: memref<64x32xf32, #tpu.memory_space<vmem>>, %arg2: memref<64x32xf32, #tpu.memory_space<vmem>>, %arg3: memref<128x128xbf16, #tpu.memory_space<vmem>>, %arg4: memref<128x128xbf16, #tpu.memory_space<vmem>>, %arg5: memref<1x128xf32, #tpu.memory_space<vmem>>, %arg6: memref<128x128xbf16, #tpu.memory_space<vmem>>, %arg7: memref<1x128xf32, #tpu.memory_space<vmem>>, %arg8: memref<64x128xf32, #tpu.memory_space<vmem>>) attributes {dimension_semantics = [#tpu.dimension_semantics<parallel>], iteration_bounds = array<i64: 2>, scalar_prefetch = 0 : i64, scratch_operands = 0 : i64, tpu.core_type = #tpu.core_type<tc>, window_params = [{transform_indices = @transform_0, window_bounds = array<i64: 64, 32>}, {transform_indices = @transform_1, window_bounds = array<i64: 64, 32>}, {pipeline_mode = #tpu.pipeline_mode<synchronous>, transform_indices = @transform_2, window_bounds = array<i64: 128, 128>}, {pipeline_mode = #tpu.pipeline_mode<synchronous>, transform_indices = @transform_3, window_bounds = array<i64: 128, 128>}, {pipeline_mode = #tpu.pipeline_mode<synchronous>, transform_indices = @transform_4, window_bounds = array<i64: 1, 128>}, {pipeline_mode = #tpu.pipeline_mode<synchronous>, transform_indices = @transform_5, window_bounds = array<i64: 128, 128>}, {pipeline_mode = #tpu.pipeline_mode<synchronous>, transform_indices = @transform_6, window_bounds = array<i64: 1, 128>}, {transform_indices = @transform_7, window_bounds = array<i64: 64, 128>}]} {
    %c0 = arith.constant 0 : index
    %c0_0 = arith.constant 0 : index
    %0 = vector.load %arg1[%c0, %c0_0] : memref<64x32xf32, #tpu.memory_space<vmem>>, vector<64x32xf32>
    %1 = arith.truncf %0 : vector<64x32xf32> to vector<64x32xbf16>
    %c0_1 = arith.constant 0 : index
    %c0_2 = arith.constant 0 : index
    %2 = vector.load %arg2[%c0_1, %c0_2] : memref<64x32xf32, #tpu.memory_space<vmem>>, vector<64x32xf32>
    %3 = arith.truncf %2 : vector<64x32xf32> to vector<64x32xbf16>
    %cst = arith.constant 0.000000e+00 : bf16
    %4 = vector.broadcast %cst : bf16 to vector<64x96xbf16>
    %5 = tpu.concatenate %1, %4 in 1 : vector<64x32xbf16>, vector<64x96xbf16> -> vector<64x128xbf16>
    %6 = tpu.concatenate %3, %4 in 1 : vector<64x32xbf16>, vector<64x96xbf16> -> vector<64x128xbf16>
    %c0_3 = arith.constant 0 : index
    %c0_4 = arith.constant 0 : index
    %7 = vector.load %arg3[%c0_3, %c0_4] : memref<128x128xbf16, #tpu.memory_space<vmem>>, vector<128x128xbf16>
    %cst_5 = arith.constant dense<0.000000e+00> : vector<64x128xf32>
    %8 = tpu.matmul %5, %7, %cst_5 {dimension_numbers = #tpu.dot_dimension_numbers<[1], [1], [0], [0], [0, 0, 1, 0], [], []>} : vector<64x128xbf16>, vector<128x128xbf16>, vector<64x128xf32> -> vector<64x128xf32>
    %c0_6 = arith.constant 0 : index
    %c0_7 = arith.constant 0 : index
    %9 = vector.load %arg4[%c0_6, %c0_7] : memref<128x128xbf16, #tpu.memory_space<vmem>>, vector<128x128xbf16>
    %cst_8 = arith.constant dense<0.000000e+00> : vector<64x128xf32>
    %10 = tpu.matmul %6, %9, %cst_8 {dimension_numbers = #tpu.dot_dimension_numbers<[1], [1], [0], [0], [0, 0, 1, 0], [], []>} : vector<64x128xbf16>, vector<128x128xbf16>, vector<64x128xf32> -> vector<64x128xf32>
    %11 = arith.addf %8, %10 : vector<64x128xf32>
    %c0_9 = arith.constant 0 : index
    %c0_10 = arith.constant 0 : index
    %12 = vector.load %arg5[%c0_9, %c0_10] : memref<1x128xf32, #tpu.memory_space<vmem>>, vector<1x128xf32>
    %13 = vector.broadcast %12 : vector<1x128xf32> to vector<64x128xf32>
    %14 = arith.addf %11, %13 : vector<64x128xf32>
    %cst_11 = arith.constant 0.000000e+00 : f32
    %15 = vector.broadcast %cst_11 : f32 to vector<64x128xf32>
    %16 = arith.maximumf %14, %15 : vector<64x128xf32>
    %17 = arith.truncf %16 : vector<64x128xf32> to vector<64x128xbf16>
    %c0_12 = arith.constant 0 : index
    %c0_13 = arith.constant 0 : index
    %18 = vector.load %arg6[%c0_12, %c0_13] : memref<128x128xbf16, #tpu.memory_space<vmem>>, vector<128x128xbf16>
    %cst_14 = arith.constant dense<0.000000e+00> : vector<64x128xf32>
    %19 = tpu.matmul %17, %18, %cst_14 {dimension_numbers = #tpu.dot_dimension_numbers<[1], [1], [0], [0], [0, 0, 1, 0], [], []>} : vector<64x128xbf16>, vector<128x128xbf16>, vector<64x128xf32> -> vector<64x128xf32>
    %c0_15 = arith.constant 0 : index
    %c0_16 = arith.constant 0 : index
    %20 = vector.load %arg7[%c0_15, %c0_16] : memref<1x128xf32, #tpu.memory_space<vmem>>, vector<1x128xf32>
    %21 = vector.broadcast %20 : vector<1x128xf32> to vector<64x128xf32>
    %22 = arith.addf %19, %21 : vector<64x128xf32>
    %c0_17 = arith.constant 0 : index
    %c0_18 = arith.constant 0 : index
    %23 = vector.load %arg8[%c0_17, %c0_18] : memref<64x128xf32, #tpu.memory_space<vmem>>, vector<64x128xf32>
    tpu.vector_store %arg8[%c0_17, %c0_18], %22 {strides = array<i32>} : memref<64x128xf32, #tpu.memory_space<vmem>>, vector<64x128xf32>,
    return
  }
  func.func @transform_0(%arg0: i32) -> (i32, i32) {
    %c0_i32 = arith.constant 0 : i32
    %c0_i32_0 = arith.constant 0 : i32
    return %arg0, %c0_i32 : i32, i32
  }
  func.func @transform_1(%arg0: i32) -> (i32, i32) {
    %c0_i32 = arith.constant 0 : i32
    %c0_i32_0 = arith.constant 0 : i32
    return %arg0, %c0_i32 : i32, i32
  }
  func.func @transform_2(%arg0: i32) -> (i32, i32) {
    %c0_i32 = arith.constant 0 : i32
    %c0_i32_0 = arith.constant 0 : i32
    %c0_i32_1 = arith.constant 0 : i32
    return %c0_i32, %c0_i32_0 : i32, i32
  }
  func.func @transform_3(%arg0: i32) -> (i32, i32) {
    %c0_i32 = arith.constant 0 : i32
    %c0_i32_0 = arith.constant 0 : i32
    %c0_i32_1 = arith.constant 0 : i32
    return %c0_i32, %c0_i32_0 : i32, i32
  }
  func.func @transform_4(%arg0: i32) -> (i32, i32) {
    %c0_i32 = arith.constant 0 : i32
    %c0_i32_0 = arith.constant 0 : i32
    %c0_i32_1 = arith.constant 0 : i32
    return %c0_i32, %c0_i32_0 : i32, i32
  }
  func.func @transform_5(%arg0: i32) -> (i32, i32) {
    %c0_i32 = arith.constant 0 : i32
    %c0_i32_0 = arith.constant 0 : i32
    %c0_i32_1 = arith.constant 0 : i32
    return %c0_i32, %c0_i32_0 : i32, i32
  }
  func.func @transform_6(%arg0: i32) -> (i32, i32) {
    %c0_i32 = arith.constant 0 : i32
    %c0_i32_0 = arith.constant 0 : i32
    %c0_i32_1 = arith.constant 0 : i32
    return %c0_i32, %c0_i32_0 : i32, i32
  }
  func.func @transform_7(%arg0: i32) -> (i32, i32) {
    %c0_i32 = arith.constant 0 : i32
    %c0_i32_0 = arith.constant 0 : i32
    return %arg0, %c0_i32 : i32, i32
  }
}

</mosaic_0001>

<llo_original>
// kernel: tpu_custom_call.1
$region0: #{tpu_custom_call.1}
  #allocation0 [shape = 'u32[]', space=smem, size = 0x4, offset = 0x4, fixed_abs, tag = 'smem constant byte address 0x4 - core index']
  #allocation1 [shape = 'u32[144,128]{1,0:T(1,128)}', space=vmem, size = 0x12000, scoped, tag = 'internal scratch']
  %s0 = inlined_call_operand.vmem [shape: f32[100,32], index: 0, kind: input, shape index: {}]
  %s1 = inlined_call_operand.vmem [shape: f32[100,32], index: 1, kind: input, shape index: {}]
  %s2 = inlined_call_operand.vmem [shape: bf16[128,128], index: 2, kind: input, shape index: {}]
  %s3 = inlined_call_operand.vmem [shape: bf16[128,128], index: 3, kind: input, shape index: {}]
  %s4 = inlined_call_operand.vmem [shape: f32[1,128], index: 4, kind: input, shape index: {}]
  %s5 = inlined_call_operand.vmem [shape: bf16[128,128], index: 5, kind: input, shape index: {}]
  %s6 = inlined_call_operand.vmem [shape: f32[1,128], index: 6, kind: input, shape index: {}]
  %s7 = inlined_call_operand.hbm [shape: f32[100,128], index: 7, kind: output, shape index: {}]
  %s8 = sld [smem:[#allocation0]]
  $region61: #{tpu_custom_call.1} parent=0
    _
  %s10 = ssub.s32 1, %s8
  %s11 = scalar_select 0, %s10, %s8
  $region1: #{tpu_custom_call.1} parent=0
    #allocation2 [shape = 'u8[65536]{0}', space=vmem, size = 0x10000, scoped, tag = 'output window, operand 0']
    #allocation3 [shape = 's32[2]{0}', space=sflag, size = 0x8, scoped, tag = 'scoped memory for tpu_custom_call.1']
    %12 = vsyncpa [#allocation3], 0
    %s13 = scalar_lea.sflag [#allocation3], 1
    %14 = vsyncpa %s13, 0
    loop: start=0, step=1, limit=4
    $region2: #{tpu_custom_call.1} parent=1 // loop_pre_header
      _
    $region3: #{tpu_custom_call.1} parent=1 // loop_header
      %s16 = sphi 0, %s20
      %p17 = scmp.ge.s32.totalorder %s16, 4
      %s26 = sphi 0, %s28
      %s29 = sphi 0, %s26
      %s30 = sphi 0, %s29
      %s46 = sphi 0, %s30
      %s52 = sphi 0, %s54
      %s55 = sphi 0, %s52
      %s56 = sphi 0, %s55
      %s72 = sphi 0, %s56
      %s76 = sphi 0, %s76
      %s78 = sphi 0, %s76
      %s79 = sphi 0, %s78
      %s93 = sphi 0, %s79
      %s97 = sphi 0, %s97
      %s99 = sphi 0, %s97
      %s100 = sphi 0, %s99
      %s114 = sphi 0, %s100
      %s118 = sphi 0, %s118
      %s120 = sphi 0, %s118
      %s121 = sphi 0, %s120
      %s135 = sphi 0, %s121
      %s139 = sphi 0, %s139
      %s141 = sphi 0, %s139
      %s142 = sphi 0, %s141
      %s156 = sphi 0, %s142
      %s160 = sphi 0, %s160
      %s162 = sphi 0, %s160
      %s163 = sphi 0, %s162
      %s177 = sphi 0, %s163
      %s183 = sphi 0, %s185
      %s186 = sphi 0, %s183
      %s187 = sphi 0, %s186
      %s203 = sphi 0, %s187
    $region4: #{tpu_custom_call.1} parent=1 // loop_header_branch
      %19 = sbr.rel (%p17) target = $region8
    $region5: #{tpu_custom_call.1} parent=1 // loop_body
      %s21 = ssub.s32 %s16, 1
      %s22 = ssub.s32 %s16, 2
      %s23 = sadd.s32 %s16, 1
      %s24 = ssub.s32 %s16, %s23
      %p25 = scmp.eq.s32.totalorder %s24, 0
      %s27 = sadd.s32 %s26, 1
      %s28 = scalar_select %p25, %s26, %s27
      %p31 = pneg %p25
      %p32 = scmp.eq.s32.totalorder %s16, 1
      %p33 = por %p31, %p32
      %p34 = scmp.ne.s32.totalorder %s26, %s29
      %p35 = scmp.eq.s32.totalorder %s16, 0
      %p36 = por %p34, %p35
      %p37 = scmp.ne.s32.totalorder %s26, %s29
      %p38 = scmp.eq.s32.totalorder %s21, 1
      %p39 = por %p37, %p38
      %p40 = scmp.ne.s32.totalorder %s29, %s30
      %p41 = scmp.eq.s32.totalorder %s21, 0
      %p42 = por %p40, %p41
      %p43 = scmp.ne.s32.totalorder %s29, %s30
      %p44 = scmp.eq.s32.totalorder %s22, 1
      %p45 = por %p43, %p44
      %p47 = scmp.ne.s32.totalorder %s30, %s46
      %p48 = scmp.eq.s32.totalorder %s22, 0
      %p49 = por %p47, %p48
      %s50 = ssub.s32 %s16, %s23
      %p51 = scmp.eq.s32.totalorder %s50, 0
      %s53 = sadd.s32 %s52, 1
      %s54 = scalar_select %p51, %s52, %s53
      %p57 = pneg %p51
      %p58 = scmp.eq.s32.totalorder %s16, 1
      %p59 = por %p57, %p58
      %p60 = scmp.ne.s32.totalorder %s52, %s55
      %p61 = scmp.eq.s32.totalorder %s16, 0
      %p62 = por %p60, %p61
      %p63 = scmp.ne.s32.totalorder %s52, %s55
      %p64 = scmp.eq.s32.totalorder %s21, 1
      %p65 = por %p63, %p64
      %p66 = scmp.ne.s32.totalorder %s55, %s56
      %p67 = scmp.eq.s32.totalorder %s21, 0
      %p68 = por %p66, %p67
      %p69 = scmp.ne.s32.totalorder %s55, %s56
      %p70 = scmp.eq.s32.totalorder %s22, 1
      %p71 = por %p69, %p70
      %p73 = scmp.ne.s32.totalorder %s56, %s72
      %p74 = scmp.eq.s32.totalorder %s22, 0
      %p75 = por %p73, %p74
      %s77 = sadd.s32 %s76, 1
      %p80 = scmp.eq.s32.totalorder %s16, 1
      %p81 = scmp.ne.s32.totalorder %s76, %s78
      %p82 = scmp.eq.s32.totalorder %s16, 0
      %p83 = por %p81, %p82
      %p84 = scmp.ne.s32.totalorder %s76, %s78
      %p85 = scmp.eq.s32.totalorder %s21, 1
      %p86 = por %p84, %p85
      %p87 = scmp.ne.s32.totalorder %s78, %s79
      %p88 = scmp.eq.s32.totalorder %s21, 0
      %p89 = por %p87, %p88
      %p90 = scmp.ne.s32.totalorder %s78, %s79
      %p91 = scmp.eq.s32.totalorder %s22, 1
      %p92 = por %p90, %p91
      %p94 = scmp.ne.s32.totalorder %s79, %s93
      %p95 = scmp.eq.s32.totalorder %s22, 0
      %p96 = por %p94, %p95
      %s98 = sadd.s32 %s97, 1
      %p101 = scmp.eq.s32.totalorder %s16, 1
      %p102 = scmp.ne.s32.totalorder %s97, %s99
      %p103 = scmp.eq.s32.totalorder %s16, 0
      %p104 = por %p102, %p103
      %p105 = scmp.ne.s32.totalorder %s97, %s99
      %p106 = scmp.eq.s32.totalorder %s21, 1
      %p107 = por %p105, %p106
      %p108 = scmp.ne.s32.totalorder %s99, %s100
      %p109 = scmp.eq.s32.totalorder %s21, 0
      %p110 = por %p108, %p109
      %p111 = scmp.ne.s32.totalorder %s99, %s100
      %p112 = scmp.eq.s32.totalorder %s22, 1
      %p113 = por %p111, %p112
      %p115 = scmp.ne.s32.totalorder %s100, %s114
      %p116 = scmp.eq.s32.totalorder %s22, 0
      %p117 = por %p115, %p116
      %s119 = sadd.s32 %s118, 1
      %p122 = scmp.eq.s32.totalorder %s16, 1
      %p123 = scmp.ne.s32.totalorder %s118, %s120
      %p124 = scmp.eq.s32.totalorder %s16, 0
      %p125 = por %p123, %p124
      %p126 = scmp.ne.s32.totalorder %s118, %s120
      %p127 = scmp.eq.s32.totalorder %s21, 1
      %p128 = por %p126, %p127
      %p129 = scmp.ne.s32.totalorder %s120, %s121
      %p130 = scmp.eq.s32.totalorder %s21, 0
      %p131 = por %p129, %p130
      %p132 = scmp.ne.s32.totalorder %s120, %s121
      %p133 = scmp.eq.s32.totalorder %s22, 1
      %p134 = por %p132, %p133
      %p136 = scmp.ne.s32.totalorder %s121, %s135
      %p137 = scmp.eq.s32.totalorder %s22, 0
      %p138 = por %p136, %p137
      %s140 = sadd.s32 %s139, 1
      %p143 = scmp.eq.s32.totalorder %s16, 1
      %p144 = scmp.ne.s32.totalorder %s139, %s141
      %p145 = scmp.eq.s32.totalorder %s16, 0
      %p146 = por %p144, %p145
      %p147 = scmp.ne.s32.totalorder %s139, %s141
      %p148 = scmp.eq.s32.totalorder %s21, 1
      %p149 = por %p147, %p148
      %p150 = scmp.ne.s32.totalorder %s141, %s142
      %p151 = scmp.eq.s32.totalorder %s21, 0
      %p152 = por %p150, %p151
      %p153 = scmp.ne.s32.totalorder %s141, %s142
      %p154 = scmp.eq.s32.totalorder %s22, 1
      %p155 = por %p153, %p154
      %p157 = scmp.ne.s32.totalorder %s142, %s156
      %p158 = scmp.eq.s32.totalorder %s22, 0
      %p159 = por %p157, %p158
      %s161 = sadd.s32 %s160, 1
      %p164 = scmp.eq.s32.totalorder %s16, 1
      %p165 = scmp.ne.s32.totalorder %s160, %s162
      %p166 = scmp.eq.s32.totalorder %s16, 0
      %p167 = por %p165, %p166
      %p168 = scmp.ne.s32.totalorder %s160, %s162
      %p169 = scmp.eq.s32.totalorder %s21, 1
      %p170 = por %p168, %p169
      %p171 = scmp.ne.s32.totalorder %s162, %s163
      %p172 = scmp.eq.s32.totalorder %s21, 0
      %p173 = por %p171, %p172
      %p174 = scmp.ne.s32.totalorder %s162, %s163
      %p175 = scmp.eq.s32.totalorder %s22, 1
      %p176 = por %p174, %p175
      %p178 = scmp.ne.s32.totalorder %s163, %s177
      %p179 = scmp.eq.s32.totalorder %s22, 0
      %p180 = por %p178, %p179
      %s181 = ssub.s32 %s16, %s23
      %p182 = scmp.eq.s32.totalorder %s181, 0
      %s184 = sadd.s32 %s183, 1
      %s185 = scalar_select %p182, %s183, %s184
      %p188 = pneg %p182
      %p189 = scmp.eq.s32.totalorder %s16, 1
      %p190 = por %p188, %p189
      %p191 = scmp.ne.s32.totalorder %s183, %s186
      %p192 = scmp.eq.s32.totalorder %s16, 0
      %p193 = por %p191, %p192
      %p194 = scmp.ne.s32.totalorder %s183, %s186
      %p195 = scmp.eq.s32.totalorder %s21, 1
      %p196 = por %p194, %p195
      %p197 = scmp.ne.s32.totalorder %s186, %s187
      %p198 = scmp.eq.s32.totalorder %s21, 0
      %p199 = por %p197, %p198
      %p200 = scmp.ne.s32.totalorder %s186, %s187
      %p201 = scmp.eq.s32.totalorder %s22, 1
      %p202 = por %p200, %p201
      %p204 = scmp.ne.s32.totalorder %s187, %s203
      %p205 = scmp.eq.s32.totalorder %s22, 0
      %p206 = por %p204, %p205
      %p207 = scmp.le.s32.totalorder 1, %s16
      %p208 = scmp.lt.s32.totalorder %s16, 3
      %p209 = pnand %p207, %p208
      %p210 = pneg %p209
      // Predicated region
      $region9: #{tpu_custom_call.1} parent=5 // pred_check
        _
      $region10: #{tpu_custom_call.1} parent=5 // pred_check_branch
        %212 = sbr.rel (%p209) target = $region12
      $region11: #{tpu_custom_call.1} parent=5 // pred_region
        %s213 = ssub.s32 %s16, 1
        // Predicated region
        $region13: #{tpu_custom_call.1} parent=11 // pred_check
          %p214 = pneg %p89
        $region14: #{tpu_custom_call.1} parent=11 // pred_check_branch
          %216 = sbr.rel (%p214) target = $region16
        $region15: #{tpu_custom_call.1} parent=11 // pred_region
          _
        $region16: #{tpu_custom_call.1} parent=11 // pred_fallthru
          _
        // Predicated region
        $region17: #{tpu_custom_call.1} parent=11 // pred_check
          %p217 = pneg %p110
        $region18: #{tpu_custom_call.1} parent=11 // pred_check_branch
          %219 = sbr.rel (%p217) target = $region20
        $region19: #{tpu_custom_call.1} parent=11 // pred_region
          _
        $region20: #{tpu_custom_call.1} parent=11 // pred_fallthru
          _
        // Predicated region
        $region21: #{tpu_custom_call.1} parent=11 // pred_check
          %p220 = pneg %p131
        $region22: #{tpu_custom_call.1} parent=11 // pred_check_branch
          %222 = sbr.rel (%p220) target = $region24
        $region23: #{tpu_custom_call.1} parent=11 // pred_region
          _
        $region24: #{tpu_custom_call.1} parent=11 // pred_fallthru
          _
        // Predicated region
        $region25: #{tpu_custom_call.1} parent=11 // pred_check
          %p223 = pneg %p152
        $region26: #{tpu_custom_call.1} parent=11 // pred_check_branch
          %225 = sbr.rel (%p223) target = $region28
        $region27: #{tpu_custom_call.1} parent=11 // pred_region
          _
        $region28: #{tpu_custom_call.1} parent=11 // pred_fallthru
          _
        // Predicated region
        $region29: #{tpu_custom_call.1} parent=11 // pred_check
          %p226 = pneg %p173
        $region30: #{tpu_custom_call.1} parent=11 // pred_check_branch
          %228 = sbr.rel (%p226) target = $region32
        $region31: #{tpu_custom_call.1} parent=11 // pred_region
          _
        $region32: #{tpu_custom_call.1} parent=11 // pred_fallthru
          _
      $region12: #{tpu_custom_call.1} parent=5 // pred_fallthru
        _
      %p229 = scmp.lt.s32.totalorder %s16, 2
      // Predicated region
      $region33: #{tpu_custom_call.1} parent=5 // pred_check
        %p230 = pneg %p229
      $region34: #{tpu_custom_call.1} parent=5 // pred_check_branch
        %232 = sbr.rel (%p230) target = $region36
      $region35: #{tpu_custom_call.1} parent=5 // pred_region
        // Predicated region
        $region37: #{tpu_custom_call.1} parent=35 // pred_check
          %p233 = pneg %p36
        $region38: #{tpu_custom_call.1} parent=35 // pred_check_branch
          %235 = sbr.rel (%p233) target = $region40
        $region39: #{tpu_custom_call.1} parent=35 // pred_region
          %s236 = smul.u32 8, %s16
          %s237 = ssub.s32 13, %s236
          %p238 = scmp.lt.s32.totalorder %s237, 8
          %s239 = scalar_select %p238, %s237, 8
          %s240 = smul.u32 128, %s239
          %p241 = scmp.lt.s32.totalorder %s236, 12
          %s242 = scalar_select %p241, %s236, 12
          %s243 = smul.addr %s242, 8
          %s244 = scalar_lea.vmem %s0, %s243
          %s245 = smul.u32 8, %s16
          %s246 = ssub.s32 13, %s245
          %p247 = scmp.lt.s32.totalorder %s246, 8
          %s248 = scalar_select %p247, %s246, 8
          %s249 = smul.u32 128, %s248
        $region40: #{tpu_custom_call.1} parent=35 // pred_fallthru
          _
        // Predicated region
        $region41: #{tpu_custom_call.1} parent=35 // pred_check
          %p250 = pneg %p62
        $region42: #{tpu_custom_call.1} parent=35 // pred_check_branch
          %252 = sbr.rel (%p250) target = $region44
        $region43: #{tpu_custom_call.1} parent=35 // pred_region
          %s253 = smul.u32 8, %s16
          %s254 = ssub.s32 13, %s253
          %p255 = scmp.lt.s32.totalorder %s254, 8
          %s256 = scalar_select %p255, %s254, 8
          %s257 = smul.u32 128, %s256
          %p258 = scmp.lt.s32.totalorder %s253, 12
          %s259 = scalar_select %p258, %s253, 12
          %s260 = smul.addr %s259, 8
          %s261 = scalar_lea.vmem %s1, %s260
          %s262 = smul.u32 8, %s16
          %s263 = ssub.s32 13, %s262
          %p264 = scmp.lt.s32.totalorder %s263, 8
          %s265 = scalar_select %p264, %s263, 8
          %s266 = smul.u32 128, %s265
        $region44: #{tpu_custom_call.1} parent=35 // pred_fallthru
          _
      $region36: #{tpu_custom_call.1} parent=5 // pred_fallthru
        _
      %p267 = scmp.le.s32.totalorder 1, %s16
      %p268 = scmp.lt.s32.totalorder %s16, 3
      %p269 = pnand %p267, %p268
      %p270 = pneg %p269
      // Predicated region
      $region45: #{tpu_custom_call.1} parent=5 // pred_check
        _
      $region46: #{tpu_custom_call.1} parent=5 // pred_check_branch
        %272 = sbr.rel (%p269) target = $region48
      $region47: #{tpu_custom_call.1} parent=5 // pred_region
        %s273 = ssub.s32 %s16, 1
        %s274 = smul.u32 8, %s21
        %s275 = ssub.s32 13, %s274
        %p276 = scmp.lt.s32.totalorder %s275, 8
        %s277 = scalar_select %p276, %s275, 8
        %s278 = smul.u32 128, %s277
        %p279 = scmp.lt.s32.totalorder %s274, 12
        %s280 = scalar_select %p279, %s274, 12
        %s281 = smul.addr %s280, 8
        %s282 = scalar_lea.vmem %s0, %s281
        %p283 = pneg %p42
        %p284 = pneg %p39
        %s285 = smul.u32 8, %s21
        %s286 = ssub.s32 13, %s285
        %p287 = scmp.lt.s32.totalorder %s286, 8
        %s288 = scalar_select %p287, %s286, 8
        %s289 = smul.u32 128, %s288
        %p290 = scmp.lt.s32.totalorder %s285, 12
        %s291 = scalar_select %p290, %s285, 12
        %s292 = smul.addr %s291, 8
        %s293 = scalar_lea.vmem %s1, %s292
        %p294 = pneg %p68
        %p295 = pneg %p65
        %p296 = pneg %p89
        %p297 = pneg %p86
        %p298 = pneg %p110
        %p299 = pneg %p107
        %p300 = pneg %p131
        %p301 = pneg %p128
        %p302 = pneg %p152
        %p303 = pneg %p149
        %p304 = pneg %p173
        %p305 = pneg %p170
        %p306 = pneg %p199
        %p307 = pneg %p196
        %s308 = sand.u32 %s186, 1
        %s309 = scalar_lea.sflag [#allocation3], %s308
        %s310 = sand.u32 %s186, 1
        %s311 = smul.addr %s310, 64
        %s312 = scalar_lea.vmem [#allocation2], %s311
        %s313 = smul.u32 8, %s21
        %s314 = ssub.s32 13, %s313
        %p315 = scmp.lt.s32.totalorder %s314, 8
        %s316 = scalar_select %p315, %s314, 8
        %s317 = smul.u32 128, %s316
        %p318 = scmp.lt.s32.totalorder %s313, 12
        %s319 = scalar_select %p318, %s313, 12
        %s320 = smul.addr %s319, 8
        %s321 = scalar_lea.vmem %s0, %s320
        %s322 = smul.u32 8, %s21
        %s323 = ssub.s32 13, %s322
        %p324 = scmp.lt.s32.totalorder %s323, 8
        %s325 = scalar_select %p324, %s323, 8
        %s326 = smul.u32 128, %s325
        %s327 = smul.u32 8, %s21
        %s328 = ssub.s32 13, %s327
        %p329 = scmp.lt.s32.totalorder %s328, 8
        %s330 = scalar_select %p329, %s328, 8
        %s331 = smul.u32 128, %s330
        %p332 = scmp.lt.s32.totalorder %s327, 12
        %s333 = scalar_select %p332, %s327, 12
        %s334 = smul.addr %s333, 8
        %s335 = scalar_lea.vmem %s1, %s334
        %s336 = smul.u32 8, %s21
        %s337 = ssub.s32 13, %s336
        %p338 = scmp.lt.s32.totalorder %s337, 8
        %s339 = scalar_select %p338, %s337, 8
        %s340 = smul.u32 128, %s339
        %s341 = smul.u32 8, %s21
        %s342 = ssub.s32 13, %s341
        %p343 = scmp.lt.s32.totalorder %s342, 8
        %s344 = scalar_select %p343, %s342, 8
        %s345 = smul.u32 128, %s344
        %v347 = vld [vmem:[%s321] sm:$0xff]
        %v348 = vld [vmem:[%s321 + $0x8] sm:$0xff]
        %v349 = vld [vmem:[%s321 + $0x10] sm:$0xff]
        %v350 = vld [vmem:[%s321 + $0x18] sm:$0xff]
        %v351 = vld [vmem:[%s321 + $0x20] sm:$0xff]
        %v352 = vld [vmem:[%s321 + $0x28] sm:$0xff]
        %v353 = vld [vmem:[%s321 + $0x30] sm:$0xff]
        %v354 = vld [vmem:[%s321 + $0x38] sm:$0xff]
        %v355 = vpack.c.bf16 %v348, %v347
        %v356 = vpack.c.bf16 %v350, %v349
        %v357 = vpack.c.bf16 %v352, %v351
        %v358 = vpack.c.bf16 %v354, %v353
        %v359 = vld [vmem:[%s335] sm:$0xff]
        %v360 = vld [vmem:[%s335 + $0x8] sm:$0xff]
        %v361 = vld [vmem:[%s335 + $0x10] sm:$0xff]
        %v362 = vld [vmem:[%s335 + $0x18] sm:$0xff]
        %v363 = vld [vmem:[%s335 + $0x20] sm:$0xff]
        %v364 = vld [vmem:[%s335 + $0x28] sm:$0xff]
        %v365 = vld [vmem:[%s335 + $0x30] sm:$0xff]
        %v366 = vld [vmem:[%s335 + $0x38] sm:$0xff]
        %v367 = vpack.c.bf16 %v360, %v359
        %v368 = vpack.c.bf16 %v362, %v361
        %v369 = vpack.c.bf16 %v364, %v363
        %v370 = vpack.c.bf16 %v366, %v365
        %vm371 = vcmask 261120
        %v374 = vsel %vm371, %v355, 0
        %v377 = vsel %vm371, %v356, 0
        %v380 = vsel %vm371, %v357, 0
        %v383 = vsel %vm371, %v358, 0
        %v386 = vsel %vm371, %v367, 0
        %v389 = vsel %vm371, %v368, 0
        %v392 = vsel %vm371, %v369, 0
        %v395 = vsel %vm371, %v370, 0
        %v397 = vld [vmem:[%s2] sm:$0xf]
        %v398 = vld [vmem:[%s2 + $0x4] sm:$0xf]
        %v399 = vld [vmem:[%s2 + $0x8] sm:$0xf]
        %v400 = vld [vmem:[%s2 + $0xc] sm:$0xf]
        %v401 = vld [vmem:[%s2 + $0x10] sm:$0xf]
        %v402 = vld [vmem:[%s2 + $0x14] sm:$0xf]
        %v403 = vld [vmem:[%s2 + $0x18] sm:$0xf]
        %v404 = vld [vmem:[%s2 + $0x1c] sm:$0xf]
        %v405 = vld [vmem:[%s2 + $0x20] sm:$0xf]
        %v406 = vld [vmem:[%s2 + $0x24] sm:$0xf]
        %v407 = vld [vmem:[%s2 + $0x28] sm:$0xf]
        %v408 = vld [vmem:[%s2 + $0x2c] sm:$0xf]
        %v409 = vld [vmem:[%s2 + $0x30] sm:$0xf]
        %v410 = vld [vmem:[%s2 + $0x34] sm:$0xf]
        %v411 = vld [vmem:[%s2 + $0x38] sm:$0xf]
        %v412 = vld [vmem:[%s2 + $0x3c] sm:$0xf]
        %v413 = vld [vmem:[%s3] sm:$0xf]
        %v414 = vld [vmem:[%s3 + $0x4] sm:$0xf]
        %v415 = vld [vmem:[%s3 + $0x8] sm:$0xf]
        %v416 = vld [vmem:[%s3 + $0xc] sm:$0xf]
        %v417 = vld [vmem:[%s3 + $0x10] sm:$0xf]
        %v418 = vld [vmem:[%s3 + $0x14] sm:$0xf]
        %v419 = vld [vmem:[%s3 + $0x18] sm:$0xf]
        %v420 = vld [vmem:[%s3 + $0x1c] sm:$0xf]
        %v421 = vld [vmem:[%s3 + $0x20] sm:$0xf]
        %v422 = vld [vmem:[%s3 + $0x24] sm:$0xf]
        %v423 = vld [vmem:[%s3 + $0x28] sm:$0xf]
        %v424 = vld [vmem:[%s3 + $0x2c] sm:$0xf]
        %v425 = vld [vmem:[%s3 + $0x30] sm:$0xf]
        %v426 = vld [vmem:[%s3 + $0x34] sm:$0xf]
        %v427 = vld [vmem:[%s3 + $0x38] sm:$0xf]
        %v428 = vld [vmem:[%s3 + $0x3c] sm:$0xf]
        %v445 = vunpack.c.l.b16 %v413
        %v446 = vunpack.c.l.b16 %v414
        %v447 = vunpack.c.l.b16 %v415
        %v448 = vunpack.c.l.b16 %v416
        %v449 = vunpack.c.l.b16 %v417
        %v450 = vunpack.c.l.b16 %v418
        %v451 = vunpack.c.l.b16 %v419
        %v452 = vunpack.c.l.b16 %v420
        %v453 = vunpack.c.l.b16 %v421
        %v454 = vunpack.c.l.b16 %v422
        %v455 = vunpack.c.l.b16 %v423
        %v456 = vunpack.c.l.b16 %v424
        %v457 = vunpack.c.l.b16 %v425
        %v458 = vunpack.c.l.b16 %v426
        %v459 = vunpack.c.l.b16 %v427
        %v460 = vunpack.c.l.b16 %v428
        %v461 = vpack.c.b16 %v446, %v445
        %v462 = vpack.c.b16 %v448, %v447
        %v463 = vpack.c.b16 %v450, %v449
        %v464 = vpack.c.b16 %v452, %v451
        %v465 = vpack.c.b16 %v454, %v453
        %v466 = vpack.c.b16 %v456, %v455
        %v467 = vpack.c.b16 %v458, %v457
        %v468 = vpack.c.b16 %v460, %v459
        %477 = vmatprep.subr.bf16.mxu0 0
        %478 = vmatpush1.bf16.xpose.msra.mxu0 %v468
        %479 = vmatprep.subr.bf16.mxu0 0
        %480 = vmatpush1.bf16.xpose.msra.mxu0 %v467
        %481 = vmatprep.subr.bf16.mxu0 0
        %482 = vmatpush1.bf16.xpose.msra.mxu0 %v466
        %483 = vmatprep.subr.bf16.mxu0 0
        %484 = vmatpush1.bf16.xpose.msra.mxu0 %v465
        %485 = vmatprep.subr.bf16.mxu0 0
        %486 = vmatpush1.bf16.xpose.msra.mxu0 %v464
        %487 = vmatprep.subr.bf16.mxu0 0
        %488 = vmatpush1.bf16.xpose.msra.mxu0 %v463
        %489 = vmatprep.subr.bf16.mxu0 0
        %490 = vmatpush1.bf16.xpose.msra.mxu0 %v462
        %491 = vmatprep.subr.bf16.mxu0 0
        %492 = vmatpush1.bf16.xpose.msra.mxu0 %v461
        %493 = vmatprep.subr.bf16.mxu0 0
        %494 = vmatpush2.bf16.xpose.msra.mxu0 0
        %495 = vmatprep.subr.bf16.mxu0 0
        %496 = vmatpush2.bf16.xpose.msra.mxu0 0
        %497 = vmatprep.subr.bf16.mxu0 0
        %498 = vmatpush2.bf16.xpose.msra.mxu0 0
        %499 = vmatprep.subr.bf16.mxu0 0
        %500 = vmatpush2.bf16.xpose.msra.mxu0 0
        %501 = vmatprep.subr.bf16.mxu0 0
        %502 = vmatpush2.bf16.xpose.msra.mxu0 0
        %503 = vmatprep.subr.bf16.mxu0 0
        %504 = vmatpush2.bf16.xpose.msra.mxu0 0
        %505 = vmatprep.subr.bf16.mxu0 0
        %506 = vmatpush2.bf16.xpose.msra.mxu0 0
        %507 = vmatprep.subr.bf16.mxu0 0
        %508 = vmatpush2.bf16.xpose.msra.mxu0 0
        %509 = vmatprep.mubr.bf16.mxu0 0
        %510 = vmatmul.mubr.bf16.gmra.mxu0 %v386
        %v511 = vpop.f32.mrf.mxu0
        %v512 = vadd.f32 0.0, %v511
        %v513 = vpop.f32.mrf.mxu0
        %v514 = vpop.f32.mrf.mxu0
        %v515 = vadd.f32 0.0, %v514
        %v516 = vpop.f32.mrf.mxu0
        %517 = vmatprep.mubr.bf16.mxu0 0
        %518 = vmatmul.mubr.bf16.gmra.mxu0 %v389
        %v519 = vpop.f32.mrf.mxu0
        %v520 = vadd.f32 0.0, %v519
        %v521 = vpop.f32.mrf.mxu0
        %v522 = vpop.f32.mrf.mxu0
        %v523 = vadd.f32 0.0, %v522
        %v524 = vpop.f32.mrf.mxu0
        %525 = vmatprep.mubr.bf16.mxu0 0
        %526 = vmatmul.mubr.bf16.gmra.mxu0 %v392
        %v527 = vpop.f32.mrf.mxu0
        %v528 = vadd.f32 0.0, %v527
        %v529 = vpop.f32.mrf.mxu0
        %v530 = vpop.f32.mrf.mxu0
        %v531 = vadd.f32 0.0, %v530
        %v532 = vpop.f32.mrf.mxu0
        %533 = vmatprep.mubr.bf16.mxu0 0
        %534 = vmatmul.mubr.bf16.gmra.mxu0 %v395
        %v535 = vpop.f32.mrf.mxu0
        %v536 = vadd.f32 0.0, %v535
        %v537 = vpop.f32.mrf.mxu0
        %v538 = vpop.f32.mrf.mxu0
        %v539 = vadd.f32 0.0, %v538
        %v540 = vpop.f32.mrf.mxu0
        %541 = vdwg.mxu0
        %v558 = vunpack.c.l.b16 %v397
        %v559 = vunpack.c.l.b16 %v398
        %v560 = vunpack.c.l.b16 %v399
        %v561 = vunpack.c.l.b16 %v400
        %v562 = vunpack.c.l.b16 %v401
        %v563 = vunpack.c.l.b16 %v402
        %v564 = vunpack.c.l.b16 %v403
        %v565 = vunpack.c.l.b16 %v404
        %v566 = vunpack.c.l.b16 %v405
        %v567 = vunpack.c.l.b16 %v406
        %v568 = vunpack.c.l.b16 %v407
        %v569 = vunpack.c.l.b16 %v408
        %v570 = vunpack.c.l.b16 %v409
        %v571 = vunpack.c.l.b16 %v410
        %v572 = vunpack.c.l.b16 %v411
        %v573 = vunpack.c.l.b16 %v412
        %v574 = vpack.c.b16 %v559, %v558
        %v575 = vpack.c.b16 %v561, %v560
        %v576 = vpack.c.b16 %v563, %v562
        %v577 = vpack.c.b16 %v565, %v564
        %v578 = vpack.c.b16 %v567, %v566
        %v579 = vpack.c.b16 %v569, %v568
        %v580 = vpack.c.b16 %v571, %v570
        %v581 = vpack.c.b16 %v573, %v572
        %590 = vmatprep.subr.bf16.mxu0 0
        %591 = vmatpush1.bf16.xpose.msra.mxu0 %v581
        %592 = vmatprep.subr.bf16.mxu0 0
        %593 = vmatpush1.bf16.xpose.msra.mxu0 %v580
        %594 = vmatprep.subr.bf16.mxu0 0
        %595 = vmatpush1.bf16.xpose.msra.mxu0 %v579
        %596 = vmatprep.subr.bf16.mxu0 0
        %597 = vmatpush1.bf16.xpose.msra.mxu0 %v578
        %598 = vmatprep.subr.bf16.mxu0 0
        %599 = vmatpush1.bf16.xpose.msra.mxu0 %v577
        %600 = vmatprep.subr.bf16.mxu0 0
        %601 = vmatpush1.bf16.xpose.msra.mxu0 %v576
        %602 = vmatprep.subr.bf16.mxu0 0
        %603 = vmatpush1.bf16.xpose.msra.mxu0 %v575
        %604 = vmatprep.subr.bf16.mxu0 0
        %605 = vmatpush1.bf16.xpose.msra.mxu0 %v574
        %606 = vmatprep.subr.bf16.mxu0 0
        %607 = vmatpush2.bf16.xpose.msra.mxu0 0
        %608 = vmatprep.subr.bf16.mxu0 0
        %609 = vmatpush2.bf16.xpose.msra.mxu0 0
        %610 = vmatprep.subr.bf16.mxu0 0
        %611 = vmatpush2.bf16.xpose.msra.mxu0 0
        %612 = vmatprep.subr.bf16.mxu0 0
        %613 = vmatpush2.bf16.xpose.msra.mxu0 0
        %614 = vmatprep.subr.bf16.mxu0 0
        %615 = vmatpush2.bf16.xpose.msra.mxu0 0
        %616 = vmatprep.subr.bf16.mxu0 0
        %617 = vmatpush2.bf16.xpose.msra.mxu0 0
        %618 = vmatprep.subr.bf16.mxu0 0
        %619 = vmatpush2.bf16.xpose.msra.mxu0 0
        %620 = vmatprep.subr.bf16.mxu0 0
        %621 = vmatpush2.bf16.xpose.msra.mxu0 0
        %622 = vmatprep.mubr.bf16.mxu0 0
        %623 = vmatmul.mubr.bf16.gmra.mxu0 %v374
        %v624 = vpop.f32.mrf.mxu0
        %v625 = vadd.f32 %v512, %v624
        %v626 = vpop.f32.mrf.mxu0
        %v627 = vpop.f32.mrf.mxu0
        %v628 = vadd.f32 %v515, %v627
        %v629 = vpop.f32.mrf.mxu0
        %630 = vmatprep.mubr.bf16.mxu0 0
        %631 = vmatmul.mubr.bf16.gmra.mxu0 %v377
        %v632 = vpop.f32.mrf.mxu0
        %v633 = vadd.f32 %v520, %v632
        %v634 = vpop.f32.mrf.mxu0
        %v635 = vpop.f32.mrf.mxu0
        %v636 = vadd.f32 %v523, %v635
        %v637 = vpop.f32.mrf.mxu0
        %638 = vmatprep.mubr.bf16.mxu0 0
        %639 = vmatmul.mubr.bf16.gmra.mxu0 %v380
        %v640 = vpop.f32.mrf.mxu0
        %v641 = vadd.f32 %v528, %v640
        %v642 = vpop.f32.mrf.mxu0
        %v643 = vpop.f32.mrf.mxu0
        %v644 = vadd.f32 %v531, %v643
        %v645 = vpop.f32.mrf.mxu0
        %646 = vmatprep.mubr.bf16.mxu0 0
        %647 = vmatmul.mubr.bf16.gmra.mxu0 %v383
        %v648 = vpop.f32.mrf.mxu0
        %v649 = vadd.f32 %v536, %v648
        %v650 = vpop.f32.mrf.mxu0
        %v651 = vpop.f32.mrf.mxu0
        %v652 = vadd.f32 %v539, %v651
        %v653 = vpop.f32.mrf.mxu0
        %654 = vdwg.mxu0
        %v655 = vld [vmem:[%s4] sm:$0x1]
        %v657 = vlaneseq
        %v658 = vshrl.u32 %v657, 7
        %v659 = vsub.s32 0, %v658
        %v660 = vrot.slane %v655, %v659
        %v662 = vadd.f32 %v625, %v660
        %v663 = vadd.f32 %v628, %v660
        %v664 = vadd.f32 %v633, %v660
        %v665 = vadd.f32 %v636, %v660
        %v666 = vadd.f32 %v641, %v660
        %v667 = vadd.f32 %v644, %v660
        %v668 = vadd.f32 %v649, %v660
        %v669 = vadd.f32 %v652, %v660
        %v670 = vmax.f32 %v662, 0.0
        %v671 = vmax.f32 %v663, 0.0
        %v672 = vmax.f32 %v664, 0.0
        %v673 = vmax.f32 %v665, 0.0
        %v674 = vmax.f32 %v666, 0.0
        %v675 = vmax.f32 %v667, 0.0
        %v676 = vmax.f32 %v668, 0.0
        %v677 = vmax.f32 %v669, 0.0
        %v678 = vpack.c.bf16 %v671, %v670
        %v679 = vpack.c.bf16 %v673, %v672
        %v680 = vpack.c.bf16 %v675, %v674
        %v681 = vpack.c.bf16 %v677, %v676
        %v682 = vld [vmem:[%s5] sm:$0xf]
        %v683 = vld [vmem:[%s5 + $0x4] sm:$0xf]
        %v684 = vld [vmem:[%s5 + $0x8] sm:$0xf]
        %v685 = vld [vmem:[%s5 + $0xc] sm:$0xf]
        %v686 = vld [vmem:[%s5 + $0x10] sm:$0xf]
        %v687 = vld [vmem:[%s5 + $0x14] sm:$0xf]
        %v688 = vld [vmem:[%s5 + $0x18] sm:$0xf]
        %v689 = vld [vmem:[%s5 + $0x1c] sm:$0xf]
        %v690 = vld [vmem:[%s5 + $0x20] sm:$0xf]
        %v691 = vld [vmem:[%s5 + $0x24] sm:$0xf]
        %v692 = vld [vmem:[%s5 + $0x28] sm:$0xf]
        %v693 = vld [vmem:[%s5 + $0x2c] sm:$0xf]
        %v694 = vld [vmem:[%s5 + $0x30] sm:$0xf]
        %v695 = vld [vmem:[%s5 + $0x34] sm:$0xf]
        %v696 = vld [vmem:[%s5 + $0x38] sm:$0xf]
        %v697 = vld [vmem:[%s5 + $0x3c] sm:$0xf]
        %v698 = vld [vmem:[%s6] sm:$0x1]
        %v700 = vlaneseq
        %v701 = vshrl.u32 %v700, 7
        %v702 = vsub.s32 0, %v701
        %v703 = vrot.slane %v698, %v702
        %v721 = vunpack.c.l.b16 %v682
        %v722 = vunpack.c.l.b16 %v683
        %v723 = vunpack.c.l.b16 %v684
        %v724 = vunpack.c.l.b16 %v685
        %v725 = vunpack.c.l.b16 %v686
        %v726 = vunpack.c.l.b16 %v687
        %v727 = vunpack.c.l.b16 %v688
        %v728 = vunpack.c.l.b16 %v689
        %v729 = vunpack.c.l.b16 %v690
        %v730 = vunpack.c.l.b16 %v691
        %v731 = vunpack.c.l.b16 %v692
        %v732 = vunpack.c.l.b16 %v693
        %v733 = vunpack.c.l.b16 %v694
        %v734 = vunpack.c.l.b16 %v695
        %v735 = vunpack.c.l.b16 %v696
        %v736 = vunpack.c.l.b16 %v697
        %v737 = vpack.c.b16 %v722, %v721
        %v738 = vpack.c.b16 %v724, %v723
        %v739 = vpack.c.b16 %v726, %v725
        %v740 = vpack.c.b16 %v728, %v727
        %v741 = vpack.c.b16 %v730, %v729
        %v742 = vpack.c.b16 %v732, %v731
        %v743 = vpack.c.b16 %v734, %v733
        %v744 = vpack.c.b16 %v736, %v735
        %753 = vmatprep.subr.bf16.mxu0 0
        %754 = vmatpush1.bf16.xpose.msra.mxu0 %v744
        %755 = vmatprep.subr.bf16.mxu0 0
        %756 = vmatpush1.bf16.xpose.msra.mxu0 %v743
        %757 = vmatprep.subr.bf16.mxu0 0
        %758 = vmatpush1.bf16.xpose.msra.mxu0 %v742
        %759 = vmatprep.subr.bf16.mxu0 0
        %760 = vmatpush1.bf16.xpose.msra.mxu0 %v741
        %761 = vmatprep.subr.bf16.mxu0 0
        %762 = vmatpush1.bf16.xpose.msra.mxu0 %v740
        %763 = vmatprep.subr.bf16.mxu0 0
        %764 = vmatpush1.bf16.xpose.msra.mxu0 %v739
        %765 = vmatprep.subr.bf16.mxu0 0
        %766 = vmatpush1.bf16.xpose.msra.mxu0 %v738
        %767 = vmatprep.subr.bf16.mxu0 0
        %768 = vmatpush1.bf16.xpose.msra.mxu0 %v737
        %769 = vmatprep.subr.bf16.mxu0 0
        %770 = vmatpush2.bf16.xpose.msra.mxu0 0
        %771 = vmatprep.subr.bf16.mxu0 0
        %772 = vmatpush2.bf16.xpose.msra.mxu0 0
        %773 = vmatprep.subr.bf16.mxu0 0
        %774 = vmatpush2.bf16.xpose.msra.mxu0 0
        %775 = vmatprep.subr.bf16.mxu0 0
        %776 = vmatpush2.bf16.xpose.msra.mxu0 0
        %777 = vmatprep.subr.bf16.mxu0 0
        %778 = vmatpush2.bf16.xpose.msra.mxu0 0
        %779 = vmatprep.subr.bf16.mxu0 0
        %780 = vmatpush2.bf16.xpose.msra.mxu0 0
        %781 = vmatprep.subr.bf16.mxu0 0
        %782 = vmatpush2.bf16.xpose.msra.mxu0 0
        %783 = vmatprep.subr.bf16.mxu0 0
        %784 = vmatpush2.bf16.xpose.msra.mxu0 0
        %785 = vmatprep.mubr.bf16.mxu0 0
        %786 = vmatmul.mubr.bf16.gmra.mxu0 %v678
        %v787 = vpop.f32.mrf.mxu0
        %v788 = vadd.f32 %v703, %v787
        %v789 = vpop.f32.mrf.mxu0
        %v790 = vpop.f32.mrf.mxu0
        %v791 = vadd.f32 %v703, %v790
        %v792 = vpop.f32.mrf.mxu0
        %793 = vmatprep.mubr.bf16.mxu0 0
        %794 = vmatmul.mubr.bf16.gmra.mxu0 %v679
        %v795 = vpop.f32.mrf.mxu0
        %v796 = vadd.f32 %v703, %v795
        %v797 = vpop.f32.mrf.mxu0
        %v798 = vpop.f32.mrf.mxu0
        %v799 = vadd.f32 %v703, %v798
        %v800 = vpop.f32.mrf.mxu0
        %801 = vmatprep.mubr.bf16.mxu0 0
        %802 = vmatmul.mubr.bf16.gmra.mxu0 %v680
        %v803 = vpop.f32.mrf.mxu0
        %v804 = vadd.f32 %v703, %v803
        %v805 = vpop.f32.mrf.mxu0
        %v806 = vpop.f32.mrf.mxu0
        %v807 = vadd.f32 %v703, %v806
        %v808 = vpop.f32.mrf.mxu0
        %809 = vmatprep.mubr.bf16.mxu0 0
        %810 = vmatmul.mubr.bf16.gmra.mxu0 %v681
        %v811 = vpop.f32.mrf.mxu0
        %v812 = vadd.f32 %v703, %v811
        %v813 = vpop.f32.mrf.mxu0
        %v814 = vpop.f32.mrf.mxu0
        %v815 = vadd.f32 %v703, %v814
        %v816 = vpop.f32.mrf.mxu0
        %817 = vdwg.mxu0
        %818 = vst [vmem:[%s312] sm:$0xff] %v788
        %819 = vst [vmem:[%s312 + $0x8] sm:$0xff] %v791
        %820 = vst [vmem:[%s312 + $0x10] sm:$0xff] %v796
        %821 = vst [vmem:[%s312 + $0x18] sm:$0xff] %v799
        %822 = vst [vmem:[%s312 + $0x20] sm:$0xff] %v804
        %823 = vst [vmem:[%s312 + $0x28] sm:$0xff] %v807
        %824 = vst [vmem:[%s312 + $0x30] sm:$0xff] %v812
        %825 = vst [vmem:[%s312 + $0x38] sm:$0xff] %v815
        %s826 = sand.u32 %s186, 1
        %s827 = scalar_lea.sflag [#allocation3], %s826
        %s828 = sand.u32 %s186, 1
        %s829 = smul.addr %s828, 64
        %s830 = scalar_lea.vmem [#allocation2], %s829
        // Predicated region
        $region49: #{tpu_custom_call.1} parent=47 // pred_check
          %p831 = pneg %p196
        $region50: #{tpu_custom_call.1} parent=47 // pred_check_branch
          %833 = sbr.rel (%p831) target = $region52
        $region51: #{tpu_custom_call.1} parent=47 // pred_region
          %s834 = smul.u32 8, %s21
          %s835 = ssub.s32 13, %s834
          %p836 = scmp.lt.s32.totalorder %s835, 8
          %s837 = scalar_select %p836, %s835, 8
          %s838 = smul.u32 128, %s837
          %s840 = ssub.s32 1024, %s838
          %841 = vsyncadd %s827, %s840
          %p842 = scmp.ne.s32.totalorder 0, %s838
          %s843 = smul.addr %s834, 128
          %s844 = scalar_lea.hbm %s7, %s843
          %s845 = smul.u32 8, %s837
          %s846 = sshll.u32 %s830, 4
          %s847 = int_to_ptr.vmem [resolvable:$true] %s846
          %s848 = sshll.u32 %s845, 4
          %852 = dma.vmem_to_hbm [thread:$0]  (%p842), %s847, %s848, %s844, %s827, 128, 128, 8
        $region52: #{tpu_custom_call.1} parent=47 // pred_fallthru
          _
      $region48: #{tpu_custom_call.1} parent=5 // pred_fallthru
        _
      %p853 = scmp.le.s32.totalorder 2, %s16
      // Predicated region
      $region53: #{tpu_custom_call.1} parent=5 // pred_check
        %p854 = pneg %p853
      $region54: #{tpu_custom_call.1} parent=5 // pred_check_branch
        %856 = sbr.rel (%p854) target = $region56
      $region55: #{tpu_custom_call.1} parent=5 // pred_region
        %s857 = ssub.s32 %s16, 2
        // Predicated region
        $region57: #{tpu_custom_call.1} parent=55 // pred_check
          %p858 = pneg %p202
        $region58: #{tpu_custom_call.1} parent=55 // pred_check_branch
          %860 = sbr.rel (%p858) target = $region60
        $region59: #{tpu_custom_call.1} parent=55 // pred_region
          %s861 = sand.u32 %s187, 1
          %s862 = scalar_lea.sflag [#allocation3], %s861
          %s863 = sand.u32 %s187, 1
          %s864 = smul.addr %s863, 64
          %s865 = scalar_lea.vmem [#allocation2], %s864
          %866 = dma.done %s862, 1024
        $region60: #{tpu_custom_call.1} parent=55 // pred_fallthru
          _
      $region56: #{tpu_custom_call.1} parent=5 // pred_fallthru
        _
    $region6: #{tpu_custom_call.1} parent=1 // loop_footer
      %s20 = sadd.s32 1, %s16
    $region7: #{tpu_custom_call.1} parent=1 // loop_footer_branch
      %15 = sbr.rel target = $region3
    $region8: #{tpu_custom_call.1} parent=1 // loop_exit
      _
    %867 = vsyncpa [#allocation3], 1
    %s868 = scalar_lea.sflag [#allocation3], 1
    %869 = vsyncpa %s868, 1

// kernel: tpu_custom_call.1
$region0: #{tpu_custom_call.1}
  #allocation0 [shape = 'u32[]', space=smem, size = 0x4, offset = 0x4, fixed_abs, tag = 'smem constant byte address 0x4 - core index']
  #allocation1 [shape = 'u32[144,128]{1,0:T(1,128)}', space=vmem, size = 0x12000, scoped, tag = 'internal scratch']
  %s0 = inlined_call_operand.vmem [shape: f32[100,32], index: 0, kind: input, shape index: {}]
  %s1 = inlined_call_operand.vmem [shape: f32[100,32], index: 1, kind: input, shape index: {}]
  %s2 = inlined_call_operand.vmem [shape: bf16[128,128], index: 2, kind: input, shape index: {}]
  %s3 = inlined_call_operand.vmem [shape: bf16[128,128], index: 3, kind: input, shape index: {}]
  %s4 = inlined_call_operand.vmem [shape: f32[1,128], index: 4, kind: input, shape index: {}]
  %s5 = inlined_call_operand.vmem [shape: bf16[128,128], index: 5, kind: input, shape index: {}]
  %s6 = inlined_call_operand.vmem [shape: f32[1,128], index: 6, kind: input, shape index: {}]
  %s7 = inlined_call_operand.hbm [shape: f32[100,128], index: 7, kind: output, shape index: {}]
  %s8 = sld [smem:[#allocation0]]
  $region61: #{tpu_custom_call.1} parent=0
    _
  %s10 = ssub.s32 1, %s8
  %s11 = scalar_select 0, %s10, %s8
  $region1: #{tpu_custom_call.1} parent=0
    #allocation2 [shape = 'u8[65536]{0}', space=vmem, size = 0x10000, scoped, tag = 'output window, operand 0']
    #allocation3 [shape = 's32[2]{0}', space=sflag, size = 0x8, scoped, tag = 'scoped memory for tpu_custom_call.1']
    %12 = vsyncpa [#allocation3], 0
    %s13 = scalar_lea.sflag [#allocation3], 1
    %14 = vsyncpa %s13, 0
    loop: start=0, step=1, limit=4
    $region2: #{tpu_custom_call.1} parent=1 // loop_pre_header
      _
    $region3: #{tpu_custom_call.1} parent=1 // loop_header
      %s16 = sphi 0, %s20
      %p17 = scmp.ge.s32.totalorder %s16, 4
      %s26 = sphi 0, %s28
      %s29 = sphi 0, %s26
      %s30 = sphi 0, %s29
      %s46 = sphi 0, %s30
      %s52 = sphi 0, %s54
      %s55 = sphi 0, %s52
      %s56 = sphi 0, %s55
      %s72 = sphi 0, %s56
      %s76 = sphi 0, %s76
      %s78 = sphi 0, %s76
      %s79 = sphi 0, %s78
      %s93 = sphi 0, %s79
      %s97 = sphi 0, %s97
      %s99 = sphi 0, %s97
      %s100 = sphi 0, %s99
      %s114 = sphi 0, %s100
      %s118 = sphi 0, %s118
      %s120 = sphi 0, %s118
      %s121 = sphi 0, %s120
      %s135 = sphi 0, %s121
      %s139 = sphi 0, %s139
      %s141 = sphi 0, %s139
      %s142 = sphi 0, %s141
      %s156 = sphi 0, %s142
      %s160 = sphi 0, %s160
      %s162 = sphi 0, %s160
      %s163 = sphi 0, %s162
      %s177 = sphi 0, %s163
      %s183 = sphi 0, %s185
      %s186 = sphi 0, %s183
      %s187 = sphi 0, %s186
      %s203 = sphi 0, %s187
    $region4: #{tpu_custom_call.1} parent=1 // loop_header_branch
      %19 = sbr.rel (%p17) target = $region8
    $region5: #{tpu_custom_call.1} parent=1 // loop_body
      %s21 = ssub.s32 %s16, 1
      %s22 = ssub.s32 %s16, 2
      %s23 = sadd.s32 %s16, 1
      %s24 = ssub.s32 %s16, %s23
      %p25 = scmp.eq.s32.totalorder %s24, 0
      %s27 = sadd.s32 %s26, 1
      %s28 = scalar_select %p25, %s26, %s27
      %p31 = pneg %p25
      %p32 = scmp.eq.s32.totalorder %s16, 1
      %p33 = por %p31, %p32
      %p34 = scmp.ne.s32.totalorder %s26, %s29
      %p35 = scmp.eq.s32.totalorder %s16, 0
      %p36 = por %p34, %p35
      %p37 = scmp.ne.s32.totalorder %s26, %s29
      %p38 = scmp.eq.s32.totalorder %s21, 1
      %p39 = por %p37, %p38
      %p40 = scmp.ne.s32.totalorder %s29, %s30
      %p41 = scmp.eq.s32.totalorder %s21, 0
      %p42 = por %p40, %p41
      %p43 = scmp.ne.s32.totalorder %s29, %s30
      %p44 = scmp.eq.s32.totalorder %s22, 1
      %p45 = por %p43, %p44
      %p47 = scmp.ne.s32.totalorder %s30, %s46
      %p48 = scmp.eq.s32.totalorder %s22, 0
      %p49 = por %p47, %p48
      %s50 = ssub.s32 %s16, %s23
      %p51 = scmp.eq.s32.totalorder %s50, 0
      %s53 = sadd.s32 %s52, 1
      %s54 = scalar_select %p51, %s52, %s53
      %p57 = pneg %p51
      %p58 = scmp.eq.s32.totalorder %s16, 1
      %p59 = por %p57, %p58
      %p60 = scmp.ne.s32.totalorder %s52, %s55
      %p61 = scmp.eq.s32.totalorder %s16, 0
      %p62 = por %p60, %p61
      %p63 = scmp.ne.s32.totalorder %s52, %s55
      %p64 = scmp.eq.s32.totalorder %s21, 1
      %p65 = por %p63, %p64
      %p66 = scmp.ne.s32.totalorder %s55, %s56
      %p67 = scmp.eq.s32.totalorder %s21, 0
      %p68 = por %p66, %p67
      %p69 = scmp.ne.s32.totalorder %s55, %s56
      %p70 = scmp.eq.s32.totalorder %s22, 1
      %p71 = por %p69, %p70
      %p73 = scmp.ne.s32.totalorder %s56, %s72
      %p74 = scmp.eq.s32.totalorder %s22, 0
      %p75 = por %p73, %p74
      %s77 = sadd.s32 %s76, 1
      %p80 = scmp.eq.s32.totalorder %s16, 1
      %p81 = scmp.ne.s32.totalorder %s76, %s78
      %p82 = scmp.eq.s32.totalorder %s16, 0
      %p83 = por %p81, %p82
      %p84 = scmp.ne.s32.totalorder %s76, %s78
      %p85 = scmp.eq.s32.totalorder %s21, 1
      %p86 = por %p84, %p85
      %p87 = scmp.ne.s32.totalorder %s78, %s79
      %p88 = scmp.eq.s32.totalorder %s21, 0
      %p89 = por %p87, %p88
      %p90 = scmp.ne.s32.totalorder %s78, %s79
      %p91 = scmp.eq.s32.totalorder %s22, 1
      %p92 = por %p90, %p91
      %p94 = scmp.ne.s32.totalorder %s79, %s93
      %p95 = scmp.eq.s32.totalorder %s22, 0
      %p96 = por %p94, %p95
      %s98 = sadd.s32 %s97, 1
      %p101 = scmp.eq.s32.totalorder %s16, 1
      %p102 = scmp.ne.s32.totalorder %s97, %s99
      %p103 = scmp.eq.s32.totalorder %s16, 0
      %p104 = por %p102, %p103
      %p105 = scmp.ne.s32.totalorder %s97, %s99
      %p106 = scmp.eq.s32.totalorder %s21, 1
      %p107 = por %p105, %p106
      %p108 = scmp.ne.s32.totalorder %s99, %s100
      %p109 = scmp.eq.s32.totalorder %s21, 0
      %p110 = por %p108, %p109
      %p111 = scmp.ne.s32.totalorder %s99, %s100
      %p112 = scmp.eq.s32.totalorder %s22, 1
      %p113 = por %p111, %p112
      %p115 = scmp.ne.s32.totalorder %s100, %s114
      %p116 = scmp.eq.s32.totalorder %s22, 0
      %p117 = por %p115, %p116
      %s119 = sadd.s32 %s118, 1
      %p122 = scmp.eq.s32.totalorder %s16, 1
      %p123 = scmp.ne.s32.totalorder %s118, %s120
      %p124 = scmp.eq.s32.totalorder %s16, 0
      %p125 = por %p123, %p124
      %p126 = scmp.ne.s32.totalorder %s118, %s120
      %p127 = scmp.eq.s32.totalorder %s21, 1
      %p128 = por %p126, %p127
      %p129 = scmp.ne.s32.totalorder %s120, %s121
      %p130 = scmp.eq.s32.totalorder %s21, 0
      %p131 = por %p129, %p130
      %p132 = scmp.ne.s32.totalorder %s120, %s121
      %p133 = scmp.eq.s32.totalorder %s22, 1
      %p134 = por %p132, %p133
      %p136 = scmp.ne.s32.totalorder %s121, %s135
      %p137 = scmp.eq.s32.totalorder %s22, 0
      %p138 = por %p136, %p137
      %s140 = sadd.s32 %s139, 1
      %p143 = scmp.eq.s32.totalorder %s16, 1
      %p144 = scmp.ne.s32.totalorder %s139, %s141
      %p145 = scmp.eq.s32.totalorder %s16, 0
      %p146 = por %p144, %p145
      %p147 = scmp.ne.s32.totalorder %s139, %s141
      %p148 = scmp.eq.s32.totalorder %s21, 1
      %p149 = por %p147, %p148
      %p150 = scmp.ne.s32.totalorder %s141, %s142
      %p151 = scmp.eq.s32.totalorder %s21, 0
      %p152 = por %p150, %p151
      %p153 = scmp.ne.s32.totalorder %s141, %s142
      %p154 = scmp.eq.s32.totalorder %s22, 1
      %p155 = por %p153, %p154
      %p157 = scmp.ne.s32.totalorder %s142, %s156
      %p158 = scmp.eq.s32.totalorder %s22, 0
      %p159 = por %p157, %p158
      %s161 = sadd.s32 %s160, 1
      %p164 = scmp.eq.s32.totalorder %s16, 1
      %p165 = scmp.ne.s32.totalorder %s160, %s162
      %p166 = scmp.eq.s32.totalorder %s16, 0
      %p167 = por %p165, %p166
      %p168 = scmp.ne.s32.totalorder %s160, %s162
      %p169 = scmp.eq.s32.totalorder %s21, 1
      %p170 = por %p168, %p169
      %p171 = scmp.ne.s32.totalorder %s162, %s163
      %p172 = scmp.eq.s32.totalorder %s21, 0
      %p173 = por %p171, %p172
      %p174 = scmp.ne.s32.totalorder %s162, %s163
      %p175 = scmp.eq.s32.totalorder %s22, 1
      %p176 = por %p174, %p175
      %p178 = scmp.ne.s32.totalorder %s163, %s177
      %p179 = scmp.eq.s32.totalorder %s22, 0
      %p180 = por %p178, %p179
      %s181 = ssub.s32 %s16, %s23
      %p182 = scmp.eq.s32.totalorder %s181, 0
      %s184 = sadd.s32 %s183, 1
      %s185 = scalar_select %p182, %s183, %s184
      %p188 = pneg %p182
      %p189 = scmp.eq.s32.totalorder %s16, 1
      %p190 = por %p188, %p189
      %p191 = scmp.ne.s32.totalorder %s183, %s186
      %p192 = scmp.eq.s32.totalorder %s16, 0
      %p193 = por %p191, %p192
      %p194 = scmp.ne.s32.totalorder %s183, %s186
      %p195 = scmp.eq.s32.totalorder %s21, 1
      %p196 = por %p194, %p195
      %p197 = scmp.ne.s32.totalorder %s186, %s187
      %p198 = scmp.eq.s32.totalorder %s21, 0
      %p199 = por %p197, %p198
      %p200 = scmp.ne.s32.totalorder %s186, %s187
      %p201 = scmp.eq.s32.totalorder %s22, 1
      %p202 = por %p200, %p201
      %p204 = scmp.ne.s32.totalorder %s187, %s203
      %p205 = scmp.eq.s32.totalorder %s22, 0
      %p206 = por %p204, %p205
      %p207 = scmp.le.s32.totalorder 1, %s16
      %p208 = scmp.lt.s32.totalorder %s16, 3
      %p209 = pnand %p207, %p208
      %p210 = pneg %p209
      // Predicated region
      $region9: #{tpu_custom_call.1} parent=5 // pred_check
        _
      $region10: #{tpu_custom_call.1} parent=5 // pred_check_branch
        %212 = sbr.rel (%p209) target = $region12
      $region11: #{tpu_custom_call.1} parent=5 // pred_region
        %s213 = ssub.s32 %s16, 1
        // Predicated region
        $region13: #{tpu_custom_call.1} parent=11 // pred_check
          %p214 = pneg %p89
        $region14: #{tpu_custom_call.1} parent=11 // pred_check_branch
          %216 = sbr.rel (%p214) target = $region16
        $region15: #{tpu_custom_call.1} parent=11 // pred_region
          _
        $region16: #{tpu_custom_call.1} parent=11 // pred_fallthru
          _
        // Predicated region
        $region17: #{tpu_custom_call.1} parent=11 // pred_check
          %p217 = pneg %p110
        $region18: #{tpu_custom_call.1} parent=11 // pred_check_branch
          %219 = sbr.rel (%p217) target = $region20
        $region19: #{tpu_custom_call.1} parent=11 // pred_region
          _
        $region20: #{tpu_custom_call.1} parent=11 // pred_fallthru
          _
        // Predicated region
        $region21: #{tpu_custom_call.1} parent=11 // pred_check
          %p220 = pneg %p131
        $region22: #{tpu_custom_call.1} parent=11 // pred_check_branch
          %222 = sbr.rel (%p220) target = $region24
        $region23: #{tpu_custom_call.1} parent=11 // pred_region
          _
        $region24: #{tpu_custom_call.1} parent=11 // pred_fallthru
          _
        // Predicated region
        $region25: #{tpu_custom_call.1} parent=11 // pred_check
          %p223 = pneg %p152
        $region26: #{tpu_custom_call.1} parent=11 // pred_check_branch
          %225 = sbr.rel (%p223) target = $region28
        $region27: #{tpu_custom_call.1} parent=11 // pred_region
          _
        $region28: #{tpu_custom_call.1} parent=11 // pred_fallthru
          _
        // Predicated region
        $region29: #{tpu_custom_call.1} parent=11 // pred_check
          %p226 = pneg %p173
        $region30: #{tpu_custom_call.1} parent=11 // pred_check_branch
          %228 = sbr.rel (%p226) target = $region32
        $region31: #{tpu_custom_call.1} parent=11 // pred_region
          _
        $region32: #{tpu_custom_call.1} parent=11 // pred_fallthru
          _
      $region12: #{tpu_custom_call.1} parent=5 // pred_fallthru
        _
      %p229 = scmp.lt.s32.totalorder %s16, 2
      // Predicated region
      $region33: #{tpu_custom_call.1} parent=5 // pred_check
        %p230 = pneg %p229
      $region34: #{tpu_custom_call.1} parent=5 // pred_check_branch
        %232 = sbr.rel (%p230) target = $region36
      $region35: #{tpu_custom_call.1} parent=5 // pred_region
        // Predicated region
        $region37: #{tpu_custom_call.1} parent=35 // pred_check
          %p233 = pneg %p36
        $region38: #{tpu_custom_call.1} parent=35 // pred_check_branch
          %235 = sbr.rel (%p233) target = $region40
        $region39: #{tpu_custom_call.1} parent=35 // pred_region
          %s236 = smul.u32 8, %s16
          %s237 = ssub.s32 13, %s236
          %p238 = scmp.lt.s32.totalorder %s237, 8
          %s239 = scalar_select %p238, %s237, 8
          %s240 = smul.u32 128, %s239
          %p241 = scmp.lt.s32.totalorder %s236, 12
          %s242 = scalar_select %p241, %s236, 12
          %s243 = smul.addr %s242, 8
          %s244 = scalar_lea.vmem %s0, %s243
          %s245 = smul.u32 8, %s16
          %s246 = ssub.s32 13, %s245
          %p247 = scmp.lt.s32.totalorder %s246, 8
          %s248 = scalar_select %p247, %s246, 8
          %s249 = smul.u32 128, %s248
        $region40: #{tpu_custom_call.1} parent=35 // pred_fallthru
          _
        // Predicated region
        $region41: #{tpu_custom_call.1} parent=35 // pred_check
          %p250 = pneg %p62
        $region42: #{tpu_custom_call.1} parent=35 // pred_check_branch
          %252 = sbr.rel (%p250) target = $region44
        $region43: #{tpu_custom_call.1} parent=35 // pred_region
          %s253 = smul.u32 8, %s16
          %s254 = ssub.s32 13, %s253
          %p255 = scmp.lt.s32.totalorder %s254, 8
          %s256 = scalar_select %p255, %s254, 8
          %s257 = smul.u32 128, %s256
          %p258 = scmp.lt.s32.totalorder %s253, 12
          %s259 = scalar_select %p258, %s253, 12
          %s260 = smul.addr %s259, 8
          %s261 = scalar_lea.vmem %s1, %s260
          %s262 = smul.u32 8, %s16
          %s263 = ssub.s32 13, %s262
          %p264 = scmp.lt.s32.totalorder %s263, 8
          %s265 = scalar_select %p264, %s263, 8
          %s266 = smul.u32 128, %s265
        $region44: #{tpu_custom_call.1} parent=35 // pred_fallthru
          _
      $region36: #{tpu_custom_call.1} parent=5 // pred_fallthru
        _
      %p267 = scmp.le.s32.totalorder 1, %s16
      %p268 = scmp.lt.s32.totalorder %s16, 3
      %p269 = pnand %p267, %p268
      %p270 = pneg %p269
      // Predicated region
      $region45: #{tpu_custom_call.1} parent=5 // pred_check
        _
      $region46: #{tpu_custom_call.1} parent=5 // pred_check_branch
        %272 = sbr.rel (%p269) target = $region48
      $region47: #{tpu_custom_call.1} parent=5 // pred_region
        %s273 = ssub.s32 %s16, 1
        %s274 = smul.u32 8, %s21
        %s275 = ssub.s32 13, %s274
        %p276 = scmp.lt.s32.totalorder %s275, 8
        %s277 = scalar_select %p276, %s275, 8
        %s278 = smul.u32 128, %s277
        %p279 = scmp.lt.s32.totalorder %s274, 12
        %s280 = scalar_select %p279, %s274, 12
        %s281 = smul.addr %s280, 8
        %s282 = scalar_lea.vmem %s0, %s281
        %p283 = pneg %p42
        %p284 = pneg %p39
        %s285 = smul.u32 8, %s21
        %s286 = ssub.s32 13, %s285
        %p287 = scmp.lt.s32.totalorder %s286, 8
        %s288 = scalar_select %p287, %s286, 8
        %s289 = smul.u32 128, %s288
        %p290 = scmp.lt.s32.totalorder %s285, 12
        %s291 = scalar_select %p290, %s285, 12
        %s292 = smul.addr %s291, 8
        %s293 = scalar_lea.vmem %s1, %s292
        %p294 = pneg %p68
        %p295 = pneg %p65
        %p296 = pneg %p89
        %p297 = pneg %p86
        %p298 = pneg %p110
        %p299 = pneg %p107
        %p300 = pneg %p131
        %p301 = pneg %p128
        %p302 = pneg %p152
        %p303 = pneg %p149
        %p304 = pneg %p173
        %p305 = pneg %p170
        %p306 = pneg %p199
        %p307 = pneg %p196
        %s308 = sand.u32 %s186, 1
        %s309 = scalar_lea.sflag [#allocation3], %s308
        %s310 = sand.u32 %s186, 1
        %s311 = smul.addr %s310, 64
        %s312 = scalar_lea.vmem [#allocation2], %s311
        %s313 = smul.u32 8, %s21
        %s314 = ssub.s32 13, %s313
        %p315 = scmp.lt.s32.totalorder %s314, 8
        %s316 = scalar_select %p315, %s314, 8
        %s317 = smul.u32 128, %s316
        %p318 = scmp.lt.s32.totalorder %s313, 12
        %s319 = scalar_select %p318, %s313, 12
        %s320 = smul.addr %s319, 8
        %s321 = scalar_lea.vmem %s0, %s320
        %s322 = smul.u32 8, %s21
        %s323 = ssub.s32 13, %s322
        %p324 = scmp.lt.s32.totalorder %s323, 8
        %s325 = scalar_select %p324, %s323, 8
        %s326 = smul.u32 128, %s325
        %s327 = smul.u32 8, %s21
        %s328 = ssub.s32 13, %s327
        %p329 = scmp.lt.s32.totalorder %s328, 8
        %s330 = scalar_select %p329, %s328, 8
        %s331 = smul.u32 128, %s330
        %p332 = scmp.lt.s32.totalorder %s327, 12
        %s333 = scalar_select %p332, %s327, 12
        %s334 = smul.addr %s333, 8
        %s335 = scalar_lea.vmem %s1, %s334
        %s336 = smul.u32 8, %s21
        %s337 = ssub.s32 13, %s336
        %p338 = scmp.lt.s32.totalorder %s337, 8
        %s339 = scalar_select %p338, %s337, 8
        %s340 = smul.u32 128, %s339
        %s341 = smul.u32 8, %s21
        %s342 = ssub.s32 13, %s341
        %p343 = scmp.lt.s32.totalorder %s342, 8
        %s344 = scalar_select %p343, %s342, 8
        %s345 = smul.u32 128, %s344
        %v347 = vld [vmem:[%s321] sm:$0xff]
        %v348 = vld [vmem:[%s321 + $0x8] sm:$0xff]
        %v349 = vld [vmem:[%s321 + $0x10] sm:$0xff]
        %v350 = vld [vmem:[%s321 + $0x18] sm:$0xff]
        %v351 = vld [vmem:[%s321 + $0x20] sm:$0xff]
        %v352 = vld [vmem:[%s321 + $0x28] sm:$0xff]
        %v353 = vld [vmem:[%s321 + $0x30] sm:$0xff]
        %v354 = vld [vmem:[%s321 + $0x38] sm:$0xff]
        %v355 = vpack.c.bf16 %v348, %v347
        %v356 = vpack.c.bf16 %v350, %v349
        %v357 = vpack.c.bf16 %v352, %v351
        %v358 = vpack.c.bf16 %v354, %v353
        %v359 = vld [vmem:[%s335] sm:$0xff]
        %v360 = vld [vmem:[%s335 + $0x8] sm:$0xff]
        %v361 = vld [vmem:[%s335 + $0x10] sm:$0xff]
        %v362 = vld [vmem:[%s335 + $0x18] sm:$0xff]
        %v363 = vld [vmem:[%s335 + $0x20] sm:$0xff]
        %v364 = vld [vmem:[%s335 + $0x28] sm:$0xff]
        %v365 = vld [vmem:[%s335 + $0x30] sm:$0xff]
        %v366 = vld [vmem:[%s335 + $0x38] sm:$0xff]
        %v367 = vpack.c.bf16 %v360, %v359
        %v368 = vpack.c.bf16 %v362, %v361
        %v369 = vpack.c.bf16 %v364, %v363
        %v370 = vpack.c.bf16 %v366, %v365
        %vm371 = vcmask 261120
        %v374 = vsel %vm371, %v355, 0
        %v377 = vsel %vm371, %v356, 0
        %v380 = vsel %vm371, %v357, 0
        %v383 = vsel %vm371, %v358, 0
        %v386 = vsel %vm371, %v367, 0
        %v389 = vsel %vm371, %v368, 0
        %v392 = vsel %vm371, %v369, 0
        %v395 = vsel %vm371, %v370, 0
        %v397 = vld [vmem:[%s2] sm:$0xf]
        %v398 = vld [vmem:[%s2 + $0x4] sm:$0xf]
        %v399 = vld [vmem:[%s2 + $0x8] sm:$0xf]
        %v400 = vld [vmem:[%s2 + $0xc] sm:$0xf]
        %v401 = vld [vmem:[%s2 + $0x10] sm:$0xf]
        %v402 = vld [vmem:[%s2 + $0x14] sm:$0xf]
        %v403 = vld [vmem:[%s2 + $0x18] sm:$0xf]
        %v404 = vld [vmem:[%s2 + $0x1c] sm:$0xf]
        %v405 = vld [vmem:[%s2 + $0x20] sm:$0xf]
        %v406 = vld [vmem:[%s2 + $0x24] sm:$0xf]
        %v407 = vld [vmem:[%s2 + $0x28] sm:$0xf]
        %v408 = vld [vmem:[%s2 + $0x2c] sm:$0xf]
        %v409 = vld [vmem:[%s2 + $0x30] sm:$0xf]
        %v410 = vld [vmem:[%s2 + $0x34] sm:$0xf]
        %v411 = vld [vmem:[%s2 + $0x38] sm:$0xf]
        %v412 = vld [vmem:[%s2 + $0x3c] sm:$0xf]
        %v413 = vld [vmem:[%s3] sm:$0xf]
        %v414 = vld [vmem:[%s3 + $0x4] sm:$0xf]
        %v415 = vld [vmem:[%s3 + $0x8] sm:$0xf]
        %v416 = vld [vmem:[%s3 + $0xc] sm:$0xf]
        %v417 = vld [vmem:[%s3 + $0x10] sm:$0xf]
        %v418 = vld [vmem:[%s3 + $0x14] sm:$0xf]
        %v419 = vld [vmem:[%s3 + $0x18] sm:$0xf]
        %v420 = vld [vmem:[%s3 + $0x1c] sm:$0xf]
        %v421 = vld [vmem:[%s3 + $0x20] sm:$0xf]
        %v422 = vld [vmem:[%s3 + $0x24] sm:$0xf]
        %v423 = vld [vmem:[%s3 + $0x28] sm:$0xf]
        %v424 = vld [vmem:[%s3 + $0x2c] sm:$0xf]
        %v425 = vld [vmem:[%s3 + $0x30] sm:$0xf]
        %v426 = vld [vmem:[%s3 + $0x34] sm:$0xf]
        %v427 = vld [vmem:[%s3 + $0x38] sm:$0xf]
        %v428 = vld [vmem:[%s3 + $0x3c] sm:$0xf]
        %v445 = vunpack.c.l.b16 %v413
        %v446 = vunpack.c.l.b16 %v414
        %v447 = vunpack.c.l.b16 %v415
        %v448 = vunpack.c.l.b16 %v416
        %v449 = vunpack.c.l.b16 %v417
        %v450 = vunpack.c.l.b16 %v418
        %v451 = vunpack.c.l.b16 %v419
        %v452 = vunpack.c.l.b16 %v420
        %v453 = vunpack.c.l.b16 %v421
        %v454 = vunpack.c.l.b16 %v422
        %v455 = vunpack.c.l.b16 %v423
        %v456 = vunpack.c.l.b16 %v424
        %v457 = vunpack.c.l.b16 %v425
        %v458 = vunpack.c.l.b16 %v426
        %v459 = vunpack.c.l.b16 %v427
        %v460 = vunpack.c.l.b16 %v428
        %v461 = vpack.c.b16 %v446, %v445
        %v462 = vpack.c.b16 %v448, %v447
        %v463 = vpack.c.b16 %v450, %v449
        %v464 = vpack.c.b16 %v452, %v451
        %v465 = vpack.c.b16 %v454, %v453
        %v466 = vpack.c.b16 %v456, %v455
        %v467 = vpack.c.b16 %v458, %v457
        %v468 = vpack.c.b16 %v460, %v459
        %477 = vmatprep.subr.bf16.mxu0 0
        %478 = vmatpush1.bf16.xpose.msra.mxu0 %v468
        %479 = vmatprep.subr.bf16.mxu0 0
        %480 = vmatpush1.bf16.xpose.msra.mxu0 %v467
        %481 = vmatprep.subr.bf16.mxu0 0
        %482 = vmatpush1.bf16.xpose.msra.mxu0 %v466
        %483 = vmatprep.subr.bf16.mxu0 0
        %484 = vmatpush1.bf16.xpose.msra.mxu0 %v465
        %485 = vmatprep.subr.bf16.mxu0 0
        %486 = vmatpush1.bf16.xpose.msra.mxu0 %v464
        %487 = vmatprep.subr.bf16.mxu0 0
        %488 = vmatpush1.bf16.xpose.msra.mxu0 %v463
        %489 = vmatprep.subr.bf16.mxu0 0
        %490 = vmatpush1.bf16.xpose.msra.mxu0 %v462
        %491 = vmatprep.subr.bf16.mxu0 0
        %492 = vmatpush1.bf16.xpose.msra.mxu0 %v461
        %493 = vmatprep.subr.bf16.mxu0 0
        %494 = vmatpush2.bf16.xpose.msra.mxu0 0
        %495 = vmatprep.subr.bf16.mxu0 0
        %496 = vmatpush2.bf16.xpose.msra.mxu0 0
        %497 = vmatprep.subr.bf16.mxu0 0
        %498 = vmatpush2.bf16.xpose.msra.mxu0 0
        %499 = vmatprep.subr.bf16.mxu0 0
        %500 = vmatpush2.bf16.xpose.msra.mxu0 0
        %501 = vmatprep.subr.bf16.mxu0 0
        %502 = vmatpush2.bf16.xpose.msra.mxu0 0
        %503 = vmatprep.subr.bf16.mxu0 0
        %504 = vmatpush2.bf16.xpose.msra.mxu0 0
        %505 = vmatprep.subr.bf16.mxu0 0
        %506 = vmatpush2.bf16.xpose.msra.mxu0 0
        %507 = vmatprep.subr.bf16.mxu0 0
        %508 = vmatpush2.bf16.xpose.msra.mxu0 0
        %509 = vmatprep.mubr.bf16.mxu0 0
        %510 = vmatmul.mubr.bf16.gmra.mxu0 %v386
        %v511 = vpop.f32.mrf.mxu0
        %v512 = vadd.f32 0.0, %v511
        %v513 = vpop.f32.mrf.mxu0
        %v514 = vpop.f32.mrf.mxu0
        %v515 = vadd.f32 0.0, %v514
        %v516 = vpop.f32.mrf.mxu0
        %517 = vmatprep.mubr.bf16.mxu0 0
        %518 = vmatmul.mubr.bf16.gmra.mxu0 %v389
        %v519 = vpop.f32.mrf.mxu0
        %v520 = vadd.f32 0.0, %v519
        %v521 = vpop.f32.mrf.mxu0
        %v522 = vpop.f32.mrf.mxu0
        %v523 = vadd.f32 0.0, %v522
        %v524 = vpop.f32.mrf.mxu0
        %525 = vmatprep.mubr.bf16.mxu0 0
        %526 = vmatmul.mubr.bf16.gmra.mxu0 %v392
        %v527 = vpop.f32.mrf.mxu0
        %v528 = vadd.f32 0.0, %v527
        %v529 = vpop.f32.mrf.mxu0
        %v530 = vpop.f32.mrf.mxu0
        %v531 = vadd.f32 0.0, %v530
        %v532 = vpop.f32.mrf.mxu0
        %533 = vmatprep.mubr.bf16.mxu0 0
        %534 = vmatmul.mubr.bf16.gmra.mxu0 %v395
        %v535 = vpop.f32.mrf.mxu0
        %v536 = vadd.f32 0.0, %v535
        %v537 = vpop.f32.mrf.mxu0
        %v538 = vpop.f32.mrf.mxu0
        %v539 = vadd.f32 0.0, %v538
        %v540 = vpop.f32.mrf.mxu0
        %541 = vdwg.mxu0
        %v558 = vunpack.c.l.b16 %v397
        %v559 = vunpack.c.l.b16 %v398
        %v560 = vunpack.c.l.b16 %v399
        %v561 = vunpack.c.l.b16 %v400
        %v562 = vunpack.c.l.b16 %v401
        %v563 = vunpack.c.l.b16 %v402
        %v564 = vunpack.c.l.b16 %v403
        %v565 = vunpack.c.l.b16 %v404
        %v566 = vunpack.c.l.b16 %v405
        %v567 = vunpack.c.l.b16 %v406
        %v568 = vunpack.c.l.b16 %v407
        %v569 = vunpack.c.l.b16 %v408
        %v570 = vunpack.c.l.b16 %v409
        %v571 = vunpack.c.l.b16 %v410
        %v572 = vunpack.c.l.b16 %v411
        %v573 = vunpack.c.l.b16 %v412
        %v574 = vpack.c.b16 %v559, %v558
        %v575 = vpack.c.b16 %v561, %v560
        %v576 = vpack.c.b16 %v563, %v562
        %v577 = vpack.c.b16 %v565, %v564
        %v578 = vpack.c.b16 %v567, %v566
        %v579 = vpack.c.b16 %v569, %v568
        %v580 = vpack.c.b16 %v571, %v570
        %v581 = vpack.c.b16 %v573, %v572
        %590 = vmatprep.subr.bf16.mxu0 0
        %591 = vmatpush1.bf16.xpose.msra.mxu0 %v581
        %592 = vmatprep.subr.bf16.mxu0 0
        %593 = vmatpush1.bf16.xpose.msra.mxu0 %v580
        %594 = vmatprep.subr.bf16.mxu0 0
        %595 = vmatpush1.bf16.xpose.msra.mxu0 %v579
        %596 = vmatprep.subr.bf16.mxu0 0
        %597 = vmatpush1.bf16.xpose.msra.mxu0 %v578
        %598 = vmatprep.subr.bf16.mxu0 0
        %599 = vmatpush1.bf16.xpose.msra.mxu0 %v577
        %600 = vmatprep.subr.bf16.mxu0 0
        %601 = vmatpush1.bf16.xpose.msra.mxu0 %v576
        %602 = vmatprep.subr.bf16.mxu0 0
        %603 = vmatpush1.bf16.xpose.msra.mxu0 %v575
        %604 = vmatprep.subr.bf16.mxu0 0
        %605 = vmatpush1.bf16.xpose.msra.mxu0 %v574
        %606 = vmatprep.subr.bf16.mxu0 0
        %607 = vmatpush2.bf16.xpose.msra.mxu0 0
        %608 = vmatprep.subr.bf16.mxu0 0
        %609 = vmatpush2.bf16.xpose.msra.mxu0 0
        %610 = vmatprep.subr.bf16.mxu0 0
        %611 = vmatpush2.bf16.xpose.msra.mxu0 0
        %612 = vmatprep.subr.bf16.mxu0 0
        %613 = vmatpush2.bf16.xpose.msra.mxu0 0
        %614 = vmatprep.subr.bf16.mxu0 0
        %615 = vmatpush2.bf16.xpose.msra.mxu0 0
        %616 = vmatprep.subr.bf16.mxu0 0
        %617 = vmatpush2.bf16.xpose.msra.mxu0 0
        %618 = vmatprep.subr.bf16.mxu0 0
        %619 = vmatpush2.bf16.xpose.msra.mxu0 0
        %620 = vmatprep.subr.bf16.mxu0 0
        %621 = vmatpush2.bf16.xpose.msra.mxu0 0
        %622 = vmatprep.mubr.bf16.mxu0 0
        %623 = vmatmul.mubr.bf16.gmra.mxu0 %v374
        %v624 = vpop.f32.mrf.mxu0
        %v625 = vadd.f32 %v512, %v624
        %v626 = vpop.f32.mrf.mxu0
        %v627 = vpop.f32.mrf.mxu0
        %v628 = vadd.f32 %v515, %v627
        %v629 = vpop.f32.mrf.mxu0
        %630 = vmatprep.mubr.bf16.mxu0 0
        %631 = vmatmul.mubr.bf16.gmra.mxu0 %v377
        %v632 = vpop.f32.mrf.mxu0
        %v633 = vadd.f32 %v520, %v632
        %v634 = vpop.f32.mrf.mxu0
        %v635 = vpop.f32.mrf.mxu0
        %v636 = vadd.f32 %v523, %v635
        %v637 = vpop.f32.mrf.mxu0
        %638 = vmatprep.mubr.bf16.mxu0 0
        %639 = vmatmul.mubr.bf16.gmra.mxu0 %v380
        %v640 = vpop.f32.mrf.mxu0
        %v641 = vadd.f32 %v528, %v640
        %v642 = vpop.f32.mrf.mxu0
        %v643 = vpop.f32.mrf.mxu0
        %v644 = vadd.f32 %v531, %v643
        %v645 = vpop.f32.mrf.mxu0
        %646 = vmatprep.mubr.bf16.mxu0 0
        %647 = vmatmul.mubr.bf16.gmra.mxu0 %v383
        %v648 = vpop.f32.mrf.mxu0
        %v649 = vadd.f32 %v536, %v648
        %v650 = vpop.f32.mrf.mxu0
        %v651 = vpop.f32.mrf.mxu0
        %v652 = vadd.f32 %v539, %v651
        %v653 = vpop.f32.mrf.mxu0
        %654 = vdwg.mxu0
        %v655 = vld [vmem:[%s4] sm:$0x1]
        %v657 = vlaneseq
        %v658 = vshrl.u32 %v657, 7
        %v659 = vsub.s32 0, %v658
        %v660 = vrot.slane %v655, %v659
        %v662 = vadd.f32 %v625, %v660
        %v663 = vadd.f32 %v628, %v660
        %v664 = vadd.f32 %v633, %v660
        %v665 = vadd.f32 %v636, %v660
        %v666 = vadd.f32 %v641, %v660
        %v667 = vadd.f32 %v644, %v660
        %v668 = vadd.f32 %v649, %v660
        %v669 = vadd.f32 %v652, %v660
        %v670 = vmax.f32 %v662, 0.0
        %v671 = vmax.f32 %v663, 0.0
        %v672 = vmax.f32 %v664, 0.0
        %v673 = vmax.f32 %v665, 0.0
        %v674 = vmax.f32 %v666, 0.0
        %v675 = vmax.f32 %v667, 0.0
        %v676 = vmax.f32 %v668, 0.0
        %v677 = vmax.f32 %v669, 0.0
        %v678 = vpack.c.bf16 %v671, %v670
        %v679 = vpack.c.bf16 %v673, %v672
        %v680 = vpack.c.bf16 %v675, %v674
        %v681 = vpack.c.bf16 %v677, %v676
        %v682 = vld [vmem:[%s5] sm:$0xf]
        %v683 = vld [vmem:[%s5 + $0x4] sm:$0xf]
        %v684 = vld [vmem:[%s5 + $0x8] sm:$0xf]
        %v685 = vld [vmem:[%s5 + $0xc] sm:$0xf]
        %v686 = vld [vmem:[%s5 + $0x10] sm:$0xf]
        %v687 = vld [vmem:[%s5 + $0x14] sm:$0xf]
        %v688 = vld [vmem:[%s5 + $0x18] sm:$0xf]
        %v689 = vld [vmem:[%s5 + $0x1c] sm:$0xf]
        %v690 = vld [vmem:[%s5 + $0x20] sm:$0xf]
        %v691 = vld [vmem:[%s5 + $0x24] sm:$0xf]
        %v692 = vld [vmem:[%s5 + $0x28] sm:$0xf]
        %v693 = vld [vmem:[%s5 + $0x2c] sm:$0xf]
        %v694 = vld [vmem:[%s5 + $0x30] sm:$0xf]
        %v695 = vld [vmem:[%s5 + $0x34] sm:$0xf]
        %v696 = vld [vmem:[%s5 + $0x38] sm:$0xf]
        %v697 = vld [vmem:[%s5 + $0x3c] sm:$0xf]
        %v698 = vld [vmem:[%s6] sm:$0x1]
        %v700 = vlaneseq
        %v701 = vshrl.u32 %v700, 7
        %v702 = vsub.s32 0, %v701
        %v703 = vrot.slane %v698, %v702
        %v721 = vunpack.c.l.b16 %v682
        %v722 = vunpack.c.l.b16 %v683
        %v723 = vunpack.c.l.b16 %v684
        %v724 = vunpack.c.l.b16 %v685
        %v725 = vunpack.c.l.b16 %v686
        %v726 = vunpack.c.l.b16 %v687
        %v727 = vunpack.c.l.b16 %v688
        %v728 = vunpack.c.l.b16 %v689
        %v729 = vunpack.c.l.b16 %v690
        %v730 = vunpack.c.l.b16 %v691
        %v731 = vunpack.c.l.b16 %v692
        %v732 = vunpack.c.l.b16 %v693
        %v733 = vunpack.c.l.b16 %v694
        %v734 = vunpack.c.l.b16 %v695
        %v735 = vunpack.c.l.b16 %v696
        %v736 = vunpack.c.l.b16 %v697
        %v737 = vpack.c.b16 %v722, %v721
        %v738 = vpack.c.b16 %v724, %v723
        %v739 = vpack.c.b16 %v726, %v725
        %v740 = vpack.c.b16 %v728, %v727
        %v741 = vpack.c.b16 %v730, %v729
        %v742 = vpack.c.b16 %v732, %v731
        %v743 = vpack.c.b16 %v734, %v733
        %v744 = vpack.c.b16 %v736, %v735
        %753 = vmatprep.subr.bf16.mxu0 0
        %754 = vmatpush1.bf16.xpose.msra.mxu0 %v744
        %755 = vmatprep.subr.bf16.mxu0 0
        %756 = vmatpush1.bf16.xpose.msra.mxu0 %v743
        %757 = vmatprep.subr.bf16.mxu0 0
        %758 = vmatpush1.bf16.xpose.msra.mxu0 %v742
        %759 = vmatprep.subr.bf16.mxu0 0
        %760 = vmatpush1.bf16.xpose.msra.mxu0 %v741
        %761 = vmatprep.subr.bf16.mxu0 0
        %762 = vmatpush1.bf16.xpose.msra.mxu0 %v740
        %763 = vmatprep.subr.bf16.mxu0 0
        %764 = vmatpush1.bf16.xpose.msra.mxu0 %v739
        %765 = vmatprep.subr.bf16.mxu0 0
        %766 = vmatpush1.bf16.xpose.msra.mxu0 %v738
        %767 = vmatprep.subr.bf16.mxu0 0
        %768 = vmatpush1.bf16.xpose.msra.mxu0 %v737
        %769 = vmatprep.subr.bf16.mxu0 0
        %770 = vmatpush2.bf16.xpose.msra.mxu0 0
        %771 = vmatprep.subr.bf16.mxu0 0
        %772 = vmatpush2.bf16.xpose.msra.mxu0 0
        %773 = vmatprep.subr.bf16.mxu0 0
        %774 = vmatpush2.bf16.xpose.msra.mxu0 0
        %775 = vmatprep.subr.bf16.mxu0 0
        %776 = vmatpush2.bf16.xpose.msra.mxu0 0
        %777 = vmatprep.subr.bf16.mxu0 0
        %778 = vmatpush2.bf16.xpose.msra.mxu0 0
        %779 = vmatprep.subr.bf16.mxu0 0
        %780 = vmatpush2.bf16.xpose.msra.mxu0 0
        %781 = vmatprep.subr.bf16.mxu0 0
        %782 = vmatpush2.bf16.xpose.msra.mxu0 0
        %783 = vmatprep.subr.bf16.mxu0 0
        %784 = vmatpush2.bf16.xpose.msra.mxu0 0
        %785 = vmatprep.mubr.bf16.mxu0 0
        %786 = vmatmul.mubr.bf16.gmra.mxu0 %v678
        %v787 = vpop.f32.mrf.mxu0
        %v788 = vadd.f32 %v703, %v787
        %v789 = vpop.f32.mrf.mxu0
        %v790 = vpop.f32.mrf.mxu0
        %v791 = vadd.f32 %v703, %v790
        %v792 = vpop.f32.mrf.mxu0
        %793 = vmatprep.mubr.bf16.mxu0 0
        %794 = vmatmul.mubr.bf16.gmra.mxu0 %v679
        %v795 = vpop.f32.mrf.mxu0
        %v796 = vadd.f32 %v703, %v795
        %v797 = vpop.f32.mrf.mxu0
        %v798 = vpop.f32.mrf.mxu0
        %v799 = vadd.f32 %v703, %v798
        %v800 = vpop.f32.mrf.mxu0
        %801 = vmatprep.mubr.bf16.mxu0 0
        %802 = vmatmul.mubr.bf16.gmra.mxu0 %v680
        %v803 = vpop.f32.mrf.mxu0
        %v804 = vadd.f32 %v703, %v803
        %v805 = vpop.f32.mrf.mxu0
        %v806 = vpop.f32.mrf.mxu0
        %v807 = vadd.f32 %v703, %v806
        %v808 = vpop.f32.mrf.mxu0
        %809 = vmatprep.mubr.bf16.mxu0 0
        %810 = vmatmul.mubr.bf16.gmra.mxu0 %v681
        %v811 = vpop.f32.mrf.mxu0
        %v812 = vadd.f32 %v703, %v811
        %v813 = vpop.f32.mrf.mxu0
        %v814 = vpop.f32.mrf.mxu0
        %v815 = vadd.f32 %v703, %v814
        %v816 = vpop.f32.mrf.mxu0
        %817 = vdwg.mxu0
        %818 = vst [vmem:[%s312] sm:$0xff] %v788
        %819 = vst [vmem:[%s312 + $0x8] sm:$0xff] %v791
        %820 = vst [vmem:[%s312 + $0x10] sm:$0xff] %v796
        %821 = vst [vmem:[%s312 + $0x18] sm:$0xff] %v799
        %822 = vst [vmem:[%s312 + $0x20] sm:$0xff] %v804
        %823 = vst [vmem:[%s312 + $0x28] sm:$0xff] %v807
        %824 = vst [vmem:[%s312 + $0x30] sm:$0xff] %v812
        %825 = vst [vmem:[%s312 + $0x38] sm:$0xff] %v815
        %s826 = sand.u32 %s186, 1
        %s827 = scalar_lea.sflag [#allocation3], %s826
        %s828 = sand.u32 %s186, 1
        %s829 = smul.addr %s828, 64
        %s830 = scalar_lea.vmem [#allocation2], %s829
        // Predicated region
        $region49: #{tpu_custom_call.1} parent=47 // pred_check
          %p831 = pneg %p196
        $region50: #{tpu_custom_call.1} parent=47 // pred_check_branch
          %833 = sbr.rel (%p831) target = $region52
        $region51: #{tpu_custom_call.1} parent=47 // pred_region
          %s834 = smul.u32 8, %s21
          %s835 = ssub.s32 13, %s834
          %p836 = scmp.lt.s32.totalorder %s835, 8
          %s837 = scalar_select %p836, %s835, 8
          %s838 = smul.u32 128, %s837
          %s840 = ssub.s32 1024, %s838
          %841 = vsyncadd %s827, %s840
          %p842 = scmp.ne.s32.totalorder 0, %s838
          %s843 = smul.addr %s834, 128
          %s844 = scalar_lea.hbm %s7, %s843
          %s845 = smul.u32 8, %s837
          %s846 = sshll.u32 %s830, 4
          %s847 = int_to_ptr.vmem [resolvable:$true] %s846
          %s848 = sshll.u32 %s845, 4
          %852 = dma.vmem_to_hbm [thread:$0]  (%p842), %s847, %s848, %s844, %s827, 128, 128, 8
        $region52: #{tpu_custom_call.1} parent=47 // pred_fallthru
          _
      $region48: #{tpu_custom_call.1} parent=5 // pred_fallthru
        _
      %p853 = scmp.le.s32.totalorder 2, %s16
      // Predicated region
      $region53: #{tpu_custom_call.1} parent=5 // pred_check
        %p854 = pneg %p853
      $region54: #{tpu_custom_call.1} parent=5 // pred_check_branch
        %856 = sbr.rel (%p854) target = $region56
      $region55: #{tpu_custom_call.1} parent=5 // pred_region
        %s857 = ssub.s32 %s16, 2
        // Predicated region
        $region57: #{tpu_custom_call.1} parent=55 // pred_check
          %p858 = pneg %p202
        $region58: #{tpu_custom_call.1} parent=55 // pred_check_branch
          %860 = sbr.rel (%p858) target = $region60
        $region59: #{tpu_custom_call.1} parent=55 // pred_region
          %s861 = sand.u32 %s187, 1
          %s862 = scalar_lea.sflag [#allocation3], %s861
          %s863 = sand.u32 %s187, 1
          %s864 = smul.addr %s863, 64
          %s865 = scalar_lea.vmem [#allocation2], %s864
          %866 = dma.done %s862, 1024
        $region60: #{tpu_custom_call.1} parent=55 // pred_fallthru
          _
      $region56: #{tpu_custom_call.1} parent=5 // pred_fallthru
        _
    $region6: #{tpu_custom_call.1} parent=1 // loop_footer
      %s20 = sadd.s32 1, %s16
    $region7: #{tpu_custom_call.1} parent=1 // loop_footer_branch
      %15 = sbr.rel target = $region3
    $region8: #{tpu_custom_call.1} parent=1 // loop_exit
      _
    %867 = vsyncpa [#allocation3], 1
    %s868 = scalar_lea.sflag [#allocation3], 1
    %869 = vsyncpa %s868, 1

</llo_original>
